<compile_context>
chip_gen: v6e
topology: v6e:2x2x1
jax: 0.10.0
libtpu: 0.0.40
codegen_flags: <defaults>
</compile_context>

<pallas_src>
import functools

import jax
import jax.numpy as jnp
from jax import lax
from jax.experimental import pallas as pl
from jax.experimental.pallas import tpu as pltpu

HEAD_HIDDEN = 128   # both heads use Linear(hidden_size, 128)
CRITIC_LANE = 64    # output lane carrying the critic scalar (must be >= action_size)


def _round8(n: int) -> int:
    return ((n + 7) // 8) * 8


def _lstm_slab_layout(input_size: int, hidden_size: int):
    """Row offsets of the LSTM operands inside the packed (rows, 8H) slab."""
    offs = {}
    r = 0
    offs["wih0"] = r; r += _round8(input_size)        # (D, 8H)   x -> layer-0 gate lanes
    offs["b01"] = r;  r += 8                          # (1, 8H)   [b0 | b1]
    offs["bT"] = r;   r += 8                          # (1, 8H)   [0  | b1]  (epilogue step)
    offs["wrec"] = r; r += _round8(2 * hidden_size)   # (2H, 8H)  merged [whh0|wih1 ; 0|whh1]
    return offs, _round8(r)


def _head_slab_layout(hidden_size: int):
    """Row offsets of the fused-head operands inside the packed (rows, 256) slab."""
    offs = {}
    r = 0
    offs["w1"] = r; r += _round8(hidden_size)   # (H, 256)   [actor fc1 | critic fc1]
    offs["b1"] = r; r += 8                      # (1, 256)
    offs["w2"] = r; r += HEAD_HIDDEN            # (128, 256) lanes 0:128 actor fc2, 128:256 critic fc2
    offs["b2"] = r; r += 8                      # (1, 128 used)
    return offs, _round8(r)


# ---------------------------------------------------------------------------
# Pallas kernel: skewed 2-layer LSTM recurrence + fused actor/critic heads.
# ---------------------------------------------------------------------------
def _lstm_ac_kernel(
    x_ref,      # (T*B, D)   time-major flattened input
    lw_ref,     # (R1, 8H)   packed LSTM weights/biases (pre-transposed, g-cols x2)
    hw_ref,     # (R2, 256)  packed fused-head weights/biases
    out_ref,    # (B, 128)   actor (tanh) at lanes [0,A), critic at CRITIC_LANE
    pre_buf,    # VMEM scratch (T*B, 8H): precomputed per-step additive gate term
    *,
    batch, seq_len, hidden_size, action_size, lstm_offs, head_offs,
):
    B, T, H, A = batch, seq_len, hidden_size, action_size
    H2 = 2 * H
    lo, ho = lstm_offs, head_offs
    D = x_ref.shape[1]
    f32 = jnp.float32

    # ---- batched input projection for ALL timesteps (one MXU dot) ----------
    # pre[t*B:(t+1)*B]:  layer-0 lanes = x_t @ W_ih0 + (b_ih0+b_hh0),
    #                    layer-1 lanes = (b_ih1+b_hh1)      (g-gate cols pre-scaled x2)
    wih0 = lw_ref[lo["wih0"]:lo["wih0"] + D, :]
    b01 = lw_ref[lo["b01"]:lo["b01"] + 1, :]
    pre_buf[...] = jnp.dot(x_ref[...], wih0, preferred_element_type=f32) + b01

    wrec = lw_ref[lo["wrec"]:lo["wrec"] + H2, :]    # (2H, 8H): rows 0:H <- h1, rows H:2H <- h2
    bT = lw_ref[lo["bT"]:lo["bT"] + 1, :]

    def gate_update(gates, c12):
        # gates: (B, 8H) = [i0 i1 | f0 f1 | g0 g1 | o0 o1], 2H lanes per group.
        sig = jax.nn.sigmoid(gates)            # ONE EUP pass over all 8 gate blocks
        i12 = sig[:, 0:H2]
        f12 = sig[:, H2:2 * H2]
        g12 = sig[:, 2 * H2:3 * H2] * 2.0 - 1.0   # tanh(x) = 2*sigmoid(2x) - 1
        o12 = sig[:, 3 * H2:4 * H2]
        c_new = f12 * c12 + i12 * g12          # lane-aligned with (B, 2H) state
        h_new = o12 * jnp.tanh(c_new)          # ONE tanh covers both layers
        return h_new, c_new

    lane2h = lax.broadcasted_iota(jnp.int32, (B, H2), 1)

    # ---- skewed step s = 0: layer-0 timestep 0 only (no recurrent dot) ------
    zeros2 = jnp.zeros((B, H2), f32)
    h12, c12 = gate_update(pre_buf[0:B, :], zeros2)
    h12 = jnp.where(lane2h < H, h12, 0.0)      # discard the phantom layer-1 half
    c12 = jnp.where(lane2h < H, c12, 0.0)

    # ---- steady skewed steps s = 1..T-1: layer-0 t=s and layer-1 t=s-1 ------
    for s in range(1, T):                      # fully unrolled (T is small/static)
        gates = (jnp.dot(h12, wrec, preferred_element_type=f32)
                 + pre_buf[s * B:(s + 1) * B, :])
        h12, c12 = gate_update(gates, c12)

    # ---- skewed step s = T: layer-1 timestep T-1 only ------------------------
    gates = jnp.dot(h12, wrec, preferred_element_type=f32) + bT
    h12, _ = gate_update(gates, c12)
    h2_last = h12[:, H:H2]                     # (B, H): layer-1 hidden at t = T-1

    # ---- fused actor + critic heads -> single lane-dense (B, 128) store -----
    hw1 = hw_ref[ho["w1"]:ho["w1"] + H, :]                     # (H, 256)
    hb1 = hw_ref[ho["b1"]:ho["b1"] + 1, :]                     # (1, 256)
    hw2 = hw_ref[ho["w2"]:ho["w2"] + HEAD_HIDDEN, :]           # (128, 256)
    hb2 = hw_ref[ho["b2"]:ho["b2"] + 1, 0:HEAD_HIDDEN]         # (1, 128)

    hid = jnp.maximum(
        jnp.dot(h2_last, hw1, preferred_element_type=f32) + hb1, 0.0)   # (B, 256)
    head = (jnp.dot(hid[:, 0:HEAD_HIDDEN], hw2[:, 0:HEAD_HIDDEN],
                    preferred_element_type=f32)
            + jnp.dot(hid[:, HEAD_HIDDEN:], hw2[:, HEAD_HIDDEN:],
                      preferred_element_type=f32)
            + hb2)                                                      # (B, 128)
    col = lax.broadcasted_iota(jnp.int32, head.shape, 1)
    out_ref[...] = jnp.where(col < A, jnp.tanh(head), head)   # tanh only on actor lanes


# ---------------------------------------------------------------------------
# Parameter construction (deterministic, mirrors nn.LSTM / nn.Linear shapes)
# ---------------------------------------------------------------------------
def init_params(key, input_size, hidden_size, action_size):
    H = hidden_size
    bound = 1.0 / jnp.sqrt(jnp.float32(H))

    def u(key, shape, b):
        return jax.random.uniform(key, shape, jnp.float32, minval=-b, maxval=b)

    keys = jax.random.split(key, 20)
    p = {}
    # LSTM layer 0: W_ih (4H, D), W_hh (4H, H), b_ih (4H,), b_hh (4H,)
    p["w_ih0"] = u(keys[0], (4 * H, input_size), bound)
    p["w_hh0"] = u(keys[1], (4 * H, H), bound)
    p["b_ih0"] = u(keys[2], (4 * H,), bound)
    p["b_hh0"] = u(keys[3], (4 * H,), bound)
    # LSTM layer 1: input is hidden of layer 0
    p["w_ih1"] = u(keys[4], (4 * H, H), bound)
    p["w_hh1"] = u(keys[5], (4 * H, H), bound)
    p["b_ih1"] = u(keys[6], (4 * H,), bound)
    p["b_hh1"] = u(keys[7], (4 * H,), bound)
    # Actor: Linear(H,128), Linear(128, action_size)
    ba1 = 1.0 / jnp.sqrt(jnp.float32(H))
    ba2 = 1.0 / jnp.sqrt(jnp.float32(128))
    p["a_w1"] = u(keys[8], (128, H), ba1)
    p["a_b1"] = u(keys[9], (128,), ba1)
    p["a_w2"] = u(keys[10], (action_size, 128), ba2)
    p["a_b2"] = u(keys[11], (action_size,), ba2)
    # Critic: Linear(H,128), Linear(128,1)
    p["c_w1"] = u(keys[12], (128, H), ba1)
    p["c_b1"] = u(keys[13], (128,), ba1)
    p["c_w2"] = u(keys[14], (1, 128), ba2)
    p["c_b2"] = u(keys[15], (1,), ba2)
    return p


def pack_params(params, input_size, hidden_size, action_size):
    """Pack the 14 weight/bias tensors into two contiguous VMEM-friendly slabs.

    Gate-lane layout of the merged 8H-wide gate vector: [i0 i1 | f0 f1 | g0 g1 | o0 o1]
    (H lanes each) so the cell update is lane-aligned with the (B, 2H) [h1|h2] state.
    g-gate columns are pre-scaled by 2 to realize tanh(x) = 2*sigmoid(2x) - 1.
    Done ONCE outside the forward pass so the kernel gets 3 input DMAs total.
    """
    D, H, A = input_size, hidden_size, action_size
    assert A <= CRITIC_LANE < HEAD_HIDDEN, "critic lane must not collide with actor lanes"
    lo, lrows = _lstm_slab_layout(D, H)
    ho, hrows = _head_slab_layout(H)

    def gblk(w, gm):                 # gate block gm of a PyTorch (4H, X) weight -> (X, H)
        return w[gm * H:(gm + 1) * H, :].T

    def gvec(b, gm):
        return b[gm * H:(gm + 1) * H]

    def lanes(gm, layer):            # lane range of gate gm / layer in the 8H gate vector
        s = gm * 2 * H + layer * H
        return s, s + H

    b0 = params["b_ih0"] + params["b_hh0"]
    b1 = params["b_ih1"] + params["b_hh1"]

    lstm = jnp.zeros((lrows, 8 * H), jnp.float32)
    for gm in range(4):                                  # PyTorch gate order [i, f, g, o]
        sc = 2.0 if gm == 2 else 1.0                     # scale g-gate pre-activation by 2
        s0, e0 = lanes(gm, 0)
        s1, e1 = lanes(gm, 1)
        # batched input projection (layer-0 lanes only)
        lstm = lstm.at[lo["wih0"]:lo["wih0"] + D, s0:e0].set(sc * gblk(params["w_ih0"], gm))
        # biases
        lstm = lstm.at[lo["b01"], s0:e0].set(sc * gvec(b0, gm))
        lstm = lstm.at[lo["b01"], s1:e1].set(sc * gvec(b1, gm))
        lstm = lstm.at[lo["bT"], s1:e1].set(sc * gvec(b1, gm))
        # merged recurrent weight: rows 0:H multiply h1, rows H:2H multiply h2
        lstm = lstm.at[lo["wrec"]:lo["wrec"] + H, s0:e0].set(sc * gblk(params["w_hh0"], gm))
        lstm = lstm.at[lo["wrec"]:lo["wrec"] + H, s1:e1].set(sc * gblk(params["w_ih1"], gm))
        lstm = lstm.at[lo["wrec"] + H:lo["wrec"] + 2 * H, s1:e1].set(sc * gblk(params["w_hh1"], gm))

    head = jnp.zeros((hrows, 2 * HEAD_HIDDEN), jnp.float32)
    head = head.at[ho["w1"]:ho["w1"] + H, :HEAD_HIDDEN].set(params["a_w1"].T)
    head = head.at[ho["w1"]:ho["w1"] + H, HEAD_HIDDEN:].set(params["c_w1"].T)
    head = head.at[ho["b1"], :HEAD_HIDDEN].set(params["a_b1"])
    head = head.at[ho["b1"], HEAD_HIDDEN:].set(params["c_b1"])
    # fc2 shrunk to a 128-lane output: actor -> lanes [0, A), critic -> CRITIC_LANE.
    # lanes 0:128 hold the actor-hidden block, lanes 128:256 the critic-hidden block.
    head = head.at[ho["w2"]:ho["w2"] + HEAD_HIDDEN, :A].set(params["a_w2"].T)
    head = head.at[ho["w2"]:ho["w2"] + HEAD_HIDDEN,
                   HEAD_HIDDEN + CRITIC_LANE:HEAD_HIDDEN + CRITIC_LANE + 1].set(params["c_w2"].T)
    head = head.at[ho["b2"], :A].set(params["a_b2"])
    head = head.at[ho["b2"], CRITIC_LANE:CRITIC_LANE + 1].set(params["c_b2"])

    return {"lstm_slab": lstm, "head_slab": head}


# ---------------------------------------------------------------------------
# Wrapper: layout plumbing + pallas_call
# ---------------------------------------------------------------------------
@functools.partial(jax.jit, static_argnames=("hidden_size", "action_size"))
def lstm_memory_optimizer_forward(x, lstm_slab, head_slab, *, hidden_size, action_size):
    # x: (B, T, D) batch_first, as in the PyTorch module.
    B, T, D = x.shape
    H, A = hidden_size, action_size
    lo, _ = _lstm_slab_layout(D, H)
    ho, _ = _head_slab_layout(H)

    # Time-major flatten of the (tiny) input so the kernel is purely 2-D.
    x_tm = jnp.transpose(x, (1, 0, 2)).reshape(T * B, D).astype(jnp.float32)

    kernel = functools.partial(
        _lstm_ac_kernel,
        batch=B, seq_len=T, hidden_size=H, action_size=A,
        lstm_offs=lo, head_offs=ho,
    )

    out = pl.pallas_call(
        kernel,
        out_shape=jax.ShapeDtypeStruct((B, HEAD_HIDDEN), jnp.float32),
        # No grid: all operands are tiny single VMEM blocks; the skewed
        # recurrence is fully unrolled inside the kernel.
        in_specs=[pl.BlockSpec(memory_space=pltpu.MemorySpace.VMEM)] * 3,
        out_specs=pl.BlockSpec(memory_space=pltpu.MemorySpace.VMEM),
        scratch_shapes=[pltpu.VMEM((T * B, 8 * H), jnp.float32)],
        compiler_params=pltpu.CompilerParams(vmem_limit_bytes=4 * 1024 * 1024),
    )(x_tm, lstm_slab, head_slab)

    actor = out[:, :A]
    critic = out[:, CRITIC_LANE:CRITIC_LANE + 1]
    return actor, critic


# ---------------------------------------------------------------------------
# Pure-JAX reference (same math, raw params) for correctness check.
# ---------------------------------------------------------------------------
def reference_forward(x, params, *, action_size):
    B, T, D = x.shape
    H = params["w_hh0"].shape[1]

    def cell(x_t, h, c, wih, whh, b):
        gates = x_t @ wih.T + h @ whh.T + b
        i = jax.nn.sigmoid(gates[:, 0 * H:1 * H])
        f = jax.nn.sigmoid(gates[:, 1 * H:2 * H])
        g = jnp.tanh(gates[:, 2 * H:3 * H])
        o = jax.nn.sigmoid(gates[:, 3 * H:4 * H])
        c = f * c + i * g
        h = o * jnp.tanh(c)
        return h, c

    h1 = c1 = h2 = c2 = jnp.zeros((B, H), jnp.float32)
    b0 = params["b_ih0"] + params["b_hh0"]
    b1 = params["b_ih1"] + params["b_hh1"]
    for t in range(T):
        h1, c1 = cell(x[:, t, :], h1, c1, params["w_ih0"], params["w_hh0"], b0)
        h2, c2 = cell(h1, h2, c2, params["w_ih1"], params["w_hh1"], b1)

    a = jnp.maximum(h2 @ params["a_w1"].T + params["a_b1"], 0.0)
    actor = jnp.tanh(a @ params["a_w2"].T + params["a_b2"])
    c = jnp.maximum(h2 @ params["c_w1"].T + params["c_b1"], 0.0)
    critic = c @ params["c_w2"].T + params["c_b2"]
    return actor, critic


if __name__ == "__main__":
    B, T = 2, 8
    INPUT_SIZE, HIDDEN_SIZE, ACTION_SIZE = 16, 32, 4

    key = jax.random.PRNGKey(0)
    k_x, k_p = jax.random.split(key)
    x = jax.random.normal(k_x, (B, T, INPUT_SIZE), dtype=jnp.float32)
    params = init_params(k_p, INPUT_SIZE, HIDDEN_SIZE, ACTION_SIZE)
    packed = pack_params(params, INPUT_SIZE, HIDDEN_SIZE, ACTION_SIZE)

    actor_out, critic_out = lstm_memory_optimizer_forward(
        x, packed["lstm_slab"], packed["head_slab"],
        hidden_size=HIDDEN_SIZE, action_size=ACTION_SIZE,
    )
    jax.block_until_ready((actor_out, critic_out))

    actor_ref, critic_ref = reference_forward(x, params, action_size=ACTION_SIZE)
    assert actor_out.shape == (B, ACTION_SIZE)
    assert critic_out.shape == (B, 1)
    assert jnp.allclose(actor_out, actor_ref, atol=1e-4, rtol=1e-4)
    assert jnp.allclose(critic_out, critic_ref, atol=1e-4, rtol=1e-4)

    print("KERNEL_OK")
</pallas_src>

<mosaic_0001>
module attributes {stable_mosaic.version = 11 : i64} {
  func.func @_lstm_ac_kernel(%arg0: memref<16x16xf32, #tpu.memory_space<vmem>>, %arg1: memref<96x256xf32, #tpu.memory_space<vmem>>, %arg2: memref<176x256xf32, #tpu.memory_space<vmem>>, %arg3: memref<2x128xf32, #tpu.memory_space<vmem>>, %arg4: memref<16x256xf32, #tpu.memory_space<vmem>>) attributes {dimension_semantics = [], scalar_prefetch = 0 : i64, scratch_operands = 1 : i64, tpu.core_type = #tpu.core_type<tc>} {
    %c0 = arith.constant 0 : index
    %c0_0 = arith.constant 0 : index
    %0 = vector.load %arg1[%c0, %c0_0] : memref<96x256xf32, #tpu.memory_space<vmem>>, vector<16x256xf32>
    %c16 = arith.constant 16 : index
    %c0_1 = arith.constant 0 : index
    %1 = vector.load %arg1[%c16, %c0_1] : memref<96x256xf32, #tpu.memory_space<vmem>>, vector<1x256xf32>
    %c0_2 = arith.constant 0 : index
    %c0_3 = arith.constant 0 : index
    %2 = vector.load %arg0[%c0_2, %c0_3] : memref<16x16xf32, #tpu.memory_space<vmem>>, vector<16x16xf32>
    %cst = arith.constant dense<0.000000e+00> : vector<16x256xf32>
    %3 = tpu.matmul %2, %0, %cst {dimension_numbers = #tpu.dot_dimension_numbers<[1], [0], [0], [1], [0, 0, 1, 1], [], []>} : vector<16x16xf32>, vector<16x256xf32>, vector<16x256xf32> -> vector<16x256xf32>
    %4 = vector.broadcast %1 : vector<1x256xf32> to vector<16x256xf32>
    %5 = arith.addf %3, %4 : vector<16x256xf32>
    %c0_4 = arith.constant 0 : index
    %c0_5 = arith.constant 0 : index
    %6 = vector.load %arg4[%c0_4, %c0_5] : memref<16x256xf32, #tpu.memory_space<vmem>>, vector<16x256xf32>
    tpu.vector_store %arg4[%c0_4, %c0_5], %5 {strides = array<i32>} : memref<16x256xf32, #tpu.memory_space<vmem>>, vector<16x256xf32>,
    %c32 = arith.constant 32 : index
    %c0_6 = arith.constant 0 : index
    %7 = vector.load %arg1[%c32, %c0_6] : memref<96x256xf32, #tpu.memory_space<vmem>>, vector<64x256xf32>
    %c24 = arith.constant 24 : index
    %c0_7 = arith.constant 0 : index
    %8 = vector.load %arg1[%c24, %c0_7] : memref<96x256xf32, #tpu.memory_space<vmem>>, vector<1x256xf32>
    %9 = tpu.iota {dimensions = array<i32: 1>} : vector<2x64xi32>
    %cst_8 = arith.constant 0.000000e+00 : f32
    %10 = vector.broadcast %cst_8 : f32 to vector<2x64xf32>
    %c0_9 = arith.constant 0 : index
    %c0_10 = arith.constant 0 : index
    %11 = vector.load %arg4[%c0_9, %c0_10] : memref<16x256xf32, #tpu.memory_space<vmem>>, vector<2x256xf32>
    %12 = arith.negf %11 : vector<2x256xf32>
    %13 = math.exp %12 : vector<2x256xf32>
    %cst_11 = arith.constant 1.000000e+00 : f32
    %14 = vector.broadcast %cst_11 : f32 to vector<2x256xf32>
    %15 = arith.addf %14, %13 : vector<2x256xf32>
    %16 = arith.divf %14, %15 : vector<2x256xf32>
    %17 = vector.extract_strided_slice %16 {offsets = [0, 0], sizes = [2, 64], strides = [1, 1]} : vector<2x256xf32> to vector<2x64xf32>
    %18 = vector.extract_strided_slice %16 {offsets = [0, 64], sizes = [2, 64], strides = [1, 1]} : vector<2x256xf32> to vector<2x64xf32>
    %19 = vector.extract_strided_slice %16 {offsets = [0, 128], sizes = [2, 64], strides = [1, 1]} : vector<2x256xf32> to vector<2x64xf32>
    %cst_12 = arith.constant 2.000000e+00 : f32
    %20 = vector.broadcast %cst_12 : f32 to vector<2x64xf32>
    %21 = arith.mulf %19, %20 : vector<2x64xf32>
    %cst_13 = arith.constant 1.000000e+00 : f32
    %22 = vector.broadcast %cst_13 : f32 to vector<2x64xf32>
    %23 = arith.subf %21, %22 : vector<2x64xf32>
    %24 = vector.extract_strided_slice %16 {offsets = [0, 192], sizes = [2, 64], strides = [1, 1]} : vector<2x256xf32> to vector<2x64xf32>
    %25 = arith.mulf %18, %10 : vector<2x64xf32>
    %26 = arith.mulf %17, %23 : vector<2x64xf32>
    %27 = arith.addf %25, %26 : vector<2x64xf32>
    %28 = math.tanh %27 : vector<2x64xf32>
    %29 = arith.mulf %24, %28 : vector<2x64xf32>
    %c32_i32 = arith.constant 32 : i32
    %30 = vector.broadcast %c32_i32 : i32 to vector<2x64xi32>
    %31 = arith.cmpi slt, %9, %30 : vector<2x64xi32>
    %cst_14 = arith.constant 0.000000e+00 : f32
    %32 = vector.broadcast %cst_14 : f32 to vector<2x64xf32>
    %33 = arith.select %31, %29, %32 : vector<2x64xi1>, vector<2x64xf32>
    %c32_i32_15 = arith.constant 32 : i32
    %34 = vector.broadcast %c32_i32_15 : i32 to vector<2x64xi32>
    %35 = arith.cmpi slt, %9, %34 : vector<2x64xi32>
    %cst_16 = arith.constant 0.000000e+00 : f32
    %36 = vector.broadcast %cst_16 : f32 to vector<2x64xf32>
    %37 = arith.select %35, %27, %36 : vector<2x64xi1>, vector<2x64xf32>
    %cst_17 = arith.constant dense<0.000000e+00> : vector<2x256xf32>
    %38 = tpu.matmul %33, %7, %cst_17 {dimension_numbers = #tpu.dot_dimension_numbers<[1], [0], [0], [1], [0, 0, 1, 1], [], []>} : vector<2x64xf32>, vector<64x256xf32>, vector<2x256xf32> -> vector<2x256xf32>
    %c2 = arith.constant 2 : index
    %c0_18 = arith.constant 0 : index
    %39 = vector.load %arg4[%c2, %c0_18] : memref<16x256xf32, #tpu.memory_space<vmem>>, vector<2x256xf32>
    %40 = arith.addf %38, %39 : vector<2x256xf32>
    %41 = arith.negf %40 : vector<2x256xf32>
    %42 = math.exp %41 : vector<2x256xf32>
    %cst_19 = arith.constant 1.000000e+00 : f32
    %43 = vector.broadcast %cst_19 : f32 to vector<2x256xf32>
    %44 = arith.addf %43, %42 : vector<2x256xf32>
    %45 = arith.divf %43, %44 : vector<2x256xf32>
    %46 = vector.extract_strided_slice %45 {offsets = [0, 0], sizes = [2, 64], strides = [1, 1]} : vector<2x256xf32> to vector<2x64xf32>
    %47 = vector.extract_strided_slice %45 {offsets = [0, 64], sizes = [2, 64], strides = [1, 1]} : vector<2x256xf32> to vector<2x64xf32>
    %48 = vector.extract_strided_slice %45 {offsets = [0, 128], sizes = [2, 64], strides = [1, 1]} : vector<2x256xf32> to vector<2x64xf32>
    %cst_20 = arith.constant 2.000000e+00 : f32
    %49 = vector.broadcast %cst_20 : f32 to vector<2x64xf32>
    %50 = arith.mulf %48, %49 : vector<2x64xf32>
    %cst_21 = arith.constant 1.000000e+00 : f32
    %51 = vector.broadcast %cst_21 : f32 to vector<2x64xf32>
    %52 = arith.subf %50, %51 : vector<2x64xf32>
    %53 = vector.extract_strided_slice %45 {offsets = [0, 192], sizes = [2, 64], strides = [1, 1]} : vector<2x256xf32> to vector<2x64xf32>
    %54 = arith.mulf %47, %37 : vector<2x64xf32>
    %55 = arith.mulf %46, %52 : vector<2x64xf32>
    %56 = arith.addf %54, %55 : vector<2x64xf32>
    %57 = math.tanh %56 : vector<2x64xf32>
    %58 = arith.mulf %53, %57 : vector<2x64xf32>
    %cst_22 = arith.constant dense<0.000000e+00> : vector<2x256xf32>
    %59 = tpu.matmul %58, %7, %cst_22 {dimension_numbers = #tpu.dot_dimension_numbers<[1], [0], [0], [1], [0, 0, 1, 1], [], []>} : vector<2x64xf32>, vector<64x256xf32>, vector<2x256xf32> -> vector<2x256xf32>
    %c4 = arith.constant 4 : index
    %c0_23 = arith.constant 0 : index
    %60 = vector.load %arg4[%c4, %c0_23] : memref<16x256xf32, #tpu.memory_space<vmem>>, vector<2x256xf32>
    %61 = arith.addf %59, %60 : vector<2x256xf32>
    %62 = arith.negf %61 : vector<2x256xf32>
    %63 = math.exp %62 : vector<2x256xf32>
    %cst_24 = arith.constant 1.000000e+00 : f32
    %64 = vector.broadcast %cst_24 : f32 to vector<2x256xf32>
    %65 = arith.addf %64, %63 : vector<2x256xf32>
    %66 = arith.divf %64, %65 : vector<2x256xf32>
    %67 = vector.extract_strided_slice %66 {offsets = [0, 0], sizes = [2, 64], strides = [1, 1]} : vector<2x256xf32> to vector<2x64xf32>
    %68 = vector.extract_strided_slice %66 {offsets = [0, 64], sizes = [2, 64], strides = [1, 1]} : vector<2x256xf32> to vector<2x64xf32>
    %69 = vector.extract_strided_slice %66 {offsets = [0, 128], sizes = [2, 64], strides = [1, 1]} : vector<2x256xf32> to vector<2x64xf32>
    %cst_25 = arith.constant 2.000000e+00 : f32
    %70 = vector.broadcast %cst_25 : f32 to vector<2x64xf32>
    %71 = arith.mulf %69, %70 : vector<2x64xf32>
    %cst_26 = arith.constant 1.000000e+00 : f32
    %72 = vector.broadcast %cst_26 : f32 to vector<2x64xf32>
    %73 = arith.subf %71, %72 : vector<2x64xf32>
    %74 = vector.extract_strided_slice %66 {offsets = [0, 192], sizes = [2, 64], strides = [1, 1]} : vector<2x256xf32> to vector<2x64xf32>
    %75 = arith.mulf %68, %56 : vector<2x64xf32>
    %76 = arith.mulf %67, %73 : vector<2x64xf32>
    %77 = arith.addf %75, %76 : vector<2x64xf32>
    %78 = math.tanh %77 : vector<2x64xf32>
    %79 = arith.mulf %74, %78 : vector<2x64xf32>
    %cst_27 = arith.constant dense<0.000000e+00> : vector<2x256xf32>
    %80 = tpu.matmul %79, %7, %cst_27 {dimension_numbers = #tpu.dot_dimension_numbers<[1], [0], [0], [1], [0, 0, 1, 1], [], []>} : vector<2x64xf32>, vector<64x256xf32>, vector<2x256xf32> -> vector<2x256xf32>
    %c6 = arith.constant 6 : index
    %c0_28 = arith.constant 0 : index
    %81 = vector.load %arg4[%c6, %c0_28] : memref<16x256xf32, #tpu.memory_space<vmem>>, vector<2x256xf32>
    %82 = arith.addf %80, %81 : vector<2x256xf32>
    %83 = arith.negf %82 : vector<2x256xf32>
    %84 = math.exp %83 : vector<2x256xf32>
    %cst_29 = arith.constant 1.000000e+00 : f32
    %85 = vector.broadcast %cst_29 : f32 to vector<2x256xf32>
    %86 = arith.addf %85, %84 : vector<2x256xf32>
    %87 = arith.divf %85, %86 : vector<2x256xf32>
    %88 = vector.extract_strided_slice %87 {offsets = [0, 0], sizes = [2, 64], strides = [1, 1]} : vector<2x256xf32> to vector<2x64xf32>
    %89 = vector.extract_strided_slice %87 {offsets = [0, 64], sizes = [2, 64], strides = [1, 1]} : vector<2x256xf32> to vector<2x64xf32>
    %90 = vector.extract_strided_slice %87 {offsets = [0, 128], sizes = [2, 64], strides = [1, 1]} : vector<2x256xf32> to vector<2x64xf32>
    %cst_30 = arith.constant 2.000000e+00 : f32
    %91 = vector.broadcast %cst_30 : f32 to vector<2x64xf32>
    %92 = arith.mulf %90, %91 : vector<2x64xf32>
    %cst_31 = arith.constant 1.000000e+00 : f32
    %93 = vector.broadcast %cst_31 : f32 to vector<2x64xf32>
    %94 = arith.subf %92, %93 : vector<2x64xf32>
    %95 = vector.extract_strided_slice %87 {offsets = [0, 192], sizes = [2, 64], strides = [1, 1]} : vector<2x256xf32> to vector<2x64xf32>
    %96 = arith.mulf %89, %77 : vector<2x64xf32>
    %97 = arith.mulf %88, %94 : vector<2x64xf32>
    %98 = arith.addf %96, %97 : vector<2x64xf32>
    %99 = math.tanh %98 : vector<2x64xf32>
    %100 = arith.mulf %95, %99 : vector<2x64xf32>
    %cst_32 = arith.constant dense<0.000000e+00> : vector<2x256xf32>
    %101 = tpu.matmul %100, %7, %cst_32 {dimension_numbers = #tpu.dot_dimension_numbers<[1], [0], [0], [1], [0, 0, 1, 1], [], []>} : vector<2x64xf32>, vector<64x256xf32>, vector<2x256xf32> -> vector<2x256xf32>
    %c8 = arith.constant 8 : index
    %c0_33 = arith.constant 0 : index
    %102 = vector.load %arg4[%c8, %c0_33] : memref<16x256xf32, #tpu.memory_space<vmem>>, vector<2x256xf32>
    %103 = arith.addf %101, %102 : vector<2x256xf32>
    %104 = arith.negf %103 : vector<2x256xf32>
    %105 = math.exp %104 : vector<2x256xf32>
    %cst_34 = arith.constant 1.000000e+00 : f32
    %106 = vector.broadcast %cst_34 : f32 to vector<2x256xf32>
    %107 = arith.addf %106, %105 : vector<2x256xf32>
    %108 = arith.divf %106, %107 : vector<2x256xf32>
    %109 = vector.extract_strided_slice %108 {offsets = [0, 0], sizes = [2, 64], strides = [1, 1]} : vector<2x256xf32> to vector<2x64xf32>
    %110 = vector.extract_strided_slice %108 {offsets = [0, 64], sizes = [2, 64], strides = [1, 1]} : vector<2x256xf32> to vector<2x64xf32>
    %111 = vector.extract_strided_slice %108 {offsets = [0, 128], sizes = [2, 64], strides = [1, 1]} : vector<2x256xf32> to vector<2x64xf32>
    %cst_35 = arith.constant 2.000000e+00 : f32
    %112 = vector.broadcast %cst_35 : f32 to vector<2x64xf32>
    %113 = arith.mulf %111, %112 : vector<2x64xf32>
    %cst_36 = arith.constant 1.000000e+00 : f32
    %114 = vector.broadcast %cst_36 : f32 to vector<2x64xf32>
    %115 = arith.subf %113, %114 : vector<2x64xf32>
    %116 = vector.extract_strided_slice %108 {offsets = [0, 192], sizes = [2, 64], strides = [1, 1]} : vector<2x256xf32> to vector<2x64xf32>
    %117 = arith.mulf %110, %98 : vector<2x64xf32>
    %118 = arith.mulf %109, %115 : vector<2x64xf32>
    %119 = arith.addf %117, %118 : vector<2x64xf32>
    %120 = math.tanh %119 : vector<2x64xf32>
    %121 = arith.mulf %116, %120 : vector<2x64xf32>
    %cst_37 = arith.constant dense<0.000000e+00> : vector<2x256xf32>
    %122 = tpu.matmul %121, %7, %cst_37 {dimension_numbers = #tpu.dot_dimension_numbers<[1], [0], [0], [1], [0, 0, 1, 1], [], []>} : vector<2x64xf32>, vector<64x256xf32>, vector<2x256xf32> -> vector<2x256xf32>
    %c10 = arith.constant 10 : index
    %c0_38 = arith.constant 0 : index
    %123 = vector.load %arg4[%c10, %c0_38] : memref<16x256xf32, #tpu.memory_space<vmem>>, vector<2x256xf32>
    %124 = arith.addf %122, %123 : vector<2x256xf32>
    %125 = arith.negf %124 : vector<2x256xf32>
    %126 = math.exp %125 : vector<2x256xf32>
    %cst_39 = arith.constant 1.000000e+00 : f32
    %127 = vector.broadcast %cst_39 : f32 to vector<2x256xf32>
    %128 = arith.addf %127, %126 : vector<2x256xf32>
    %129 = arith.divf %127, %128 : vector<2x256xf32>
    %130 = vector.extract_strided_slice %129 {offsets = [0, 0], sizes = [2, 64], strides = [1, 1]} : vector<2x256xf32> to vector<2x64xf32>
    %131 = vector.extract_strided_slice %129 {offsets = [0, 64], sizes = [2, 64], strides = [1, 1]} : vector<2x256xf32> to vector<2x64xf32>
    %132 = vector.extract_strided_slice %129 {offsets = [0, 128], sizes = [2, 64], strides = [1, 1]} : vector<2x256xf32> to vector<2x64xf32>
    %cst_40 = arith.constant 2.000000e+00 : f32
    %133 = vector.broadcast %cst_40 : f32 to vector<2x64xf32>
    %134 = arith.mulf %132, %133 : vector<2x64xf32>
    %cst_41 = arith.constant 1.000000e+00 : f32
    %135 = vector.broadcast %cst_41 : f32 to vector<2x64xf32>
    %136 = arith.subf %134, %135 : vector<2x64xf32>
    %137 = vector.extract_strided_slice %129 {offsets = [0, 192], sizes = [2, 64], strides = [1, 1]} : vector<2x256xf32> to vector<2x64xf32>
    %138 = arith.mulf %131, %119 : vector<2x64xf32>
    %139 = arith.mulf %130, %136 : vector<2x64xf32>
    %140 = arith.addf %138, %139 : vector<2x64xf32>
    %141 = math.tanh %140 : vector<2x64xf32>
    %142 = arith.mulf %137, %141 : vector<2x64xf32>
    %cst_42 = arith.constant dense<0.000000e+00> : vector<2x256xf32>
    %143 = tpu.matmul %142, %7, %cst_42 {dimension_numbers = #tpu.dot_dimension_numbers<[1], [0], [0], [1], [0, 0, 1, 1], [], []>} : vector<2x64xf32>, vector<64x256xf32>, vector<2x256xf32> -> vector<2x256xf32>
    %c12 = arith.constant 12 : index
    %c0_43 = arith.constant 0 : index
    %144 = vector.load %arg4[%c12, %c0_43] : memref<16x256xf32, #tpu.memory_space<vmem>>, vector<2x256xf32>
    %145 = arith.addf %143, %144 : vector<2x256xf32>
    %146 = arith.negf %145 : vector<2x256xf32>
    %147 = math.exp %146 : vector<2x256xf32>
    %cst_44 = arith.constant 1.000000e+00 : f32
    %148 = vector.broadcast %cst_44 : f32 to vector<2x256xf32>
    %149 = arith.addf %148, %147 : vector<2x256xf32>
    %150 = arith.divf %148, %149 : vector<2x256xf32>
    %151 = vector.extract_strided_slice %150 {offsets = [0, 0], sizes = [2, 64], strides = [1, 1]} : vector<2x256xf32> to vector<2x64xf32>
    %152 = vector.extract_strided_slice %150 {offsets = [0, 64], sizes = [2, 64], strides = [1, 1]} : vector<2x256xf32> to vector<2x64xf32>
    %153 = vector.extract_strided_slice %150 {offsets = [0, 128], sizes = [2, 64], strides = [1, 1]} : vector<2x256xf32> to vector<2x64xf32>
    %cst_45 = arith.constant 2.000000e+00 : f32
    %154 = vector.broadcast %cst_45 : f32 to vector<2x64xf32>
    %155 = arith.mulf %153, %154 : vector<2x64xf32>
    %cst_46 = arith.constant 1.000000e+00 : f32
    %156 = vector.broadcast %cst_46 : f32 to vector<2x64xf32>
    %157 = arith.subf %155, %156 : vector<2x64xf32>
    %158 = vector.extract_strided_slice %150 {offsets = [0, 192], sizes = [2, 64], strides = [1, 1]} : vector<2x256xf32> to vector<2x64xf32>
    %159 = arith.mulf %152, %140 : vector<2x64xf32>
    %160 = arith.mulf %151, %157 : vector<2x64xf32>
    %161 = arith.addf %159, %160 : vector<2x64xf32>
    %162 = math.tanh %161 : vector<2x64xf32>
    %163 = arith.mulf %158, %162 : vector<2x64xf32>
    %cst_47 = arith.constant dense<0.000000e+00> : vector<2x256xf32>
    %164 = tpu.matmul %163, %7, %cst_47 {dimension_numbers = #tpu.dot_dimension_numbers<[1], [0], [0], [1], [0, 0, 1, 1], [], []>} : vector<2x64xf32>, vector<64x256xf32>, vector<2x256xf32> -> vector<2x256xf32>
    %c14 = arith.constant 14 : index
    %c0_48 = arith.constant 0 : index
    %165 = vector.load %arg4[%c14, %c0_48] : memref<16x256xf32, #tpu.memory_space<vmem>>, vector<2x256xf32>
    %166 = arith.addf %164, %165 : vector<2x256xf32>
    %167 = arith.negf %166 : vector<2x256xf32>
    %168 = math.exp %167 : vector<2x256xf32>
    %cst_49 = arith.constant 1.000000e+00 : f32
    %169 = vector.broadcast %cst_49 : f32 to vector<2x256xf32>
    %170 = arith.addf %169, %168 : vector<2x256xf32>
    %171 = arith.divf %169, %170 : vector<2x256xf32>
    %172 = vector.extract_strided_slice %171 {offsets = [0, 0], sizes = [2, 64], strides = [1, 1]} : vector<2x256xf32> to vector<2x64xf32>
    %173 = vector.extract_strided_slice %171 {offsets = [0, 64], sizes = [2, 64], strides = [1, 1]} : vector<2x256xf32> to vector<2x64xf32>
    %174 = vector.extract_strided_slice %171 {offsets = [0, 128], sizes = [2, 64], strides = [1, 1]} : vector<2x256xf32> to vector<2x64xf32>
    %cst_50 = arith.constant 2.000000e+00 : f32
    %175 = vector.broadcast %cst_50 : f32 to vector<2x64xf32>
    %176 = arith.mulf %174, %175 : vector<2x64xf32>
    %cst_51 = arith.constant 1.000000e+00 : f32
    %177 = vector.broadcast %cst_51 : f32 to vector<2x64xf32>
    %178 = arith.subf %176, %177 : vector<2x64xf32>
    %179 = vector.extract_strided_slice %171 {offsets = [0, 192], sizes = [2, 64], strides = [1, 1]} : vector<2x256xf32> to vector<2x64xf32>
    %180 = arith.mulf %173, %161 : vector<2x64xf32>
    %181 = arith.mulf %172, %178 : vector<2x64xf32>
    %182 = arith.addf %180, %181 : vector<2x64xf32>
    %183 = math.tanh %182 : vector<2x64xf32>
    %184 = arith.mulf %179, %183 : vector<2x64xf32>
    %cst_52 = arith.constant dense<0.000000e+00> : vector<2x256xf32>
    %185 = tpu.matmul %184, %7, %cst_52 {dimension_numbers = #tpu.dot_dimension_numbers<[1], [0], [0], [1], [0, 0, 1, 1], [], []>} : vector<2x64xf32>, vector<64x256xf32>, vector<2x256xf32> -> vector<2x256xf32>
    %186 = vector.broadcast %8 : vector<1x256xf32> to vector<2x256xf32>
    %187 = arith.addf %185, %186 : vector<2x256xf32>
    %188 = arith.negf %187 : vector<2x256xf32>
    %189 = math.exp %188 : vector<2x256xf32>
    %cst_53 = arith.constant 1.000000e+00 : f32
    %190 = vector.broadcast %cst_53 : f32 to vector<2x256xf32>
    %191 = arith.addf %190, %189 : vector<2x256xf32>
    %192 = arith.divf %190, %191 : vector<2x256xf32>
    %193 = vector.extract_strided_slice %192 {offsets = [0, 0], sizes = [2, 64], strides = [1, 1]} : vector<2x256xf32> to vector<2x64xf32>
    %194 = vector.extract_strided_slice %192 {offsets = [0, 64], sizes = [2, 64], strides = [1, 1]} : vector<2x256xf32> to vector<2x64xf32>
    %195 = vector.extract_strided_slice %192 {offsets = [0, 128], sizes = [2, 64], strides = [1, 1]} : vector<2x256xf32> to vector<2x64xf32>
    %cst_54 = arith.constant 2.000000e+00 : f32
    %196 = vector.broadcast %cst_54 : f32 to vector<2x64xf32>
    %197 = arith.mulf %195, %196 : vector<2x64xf32>
    %cst_55 = arith.constant 1.000000e+00 : f32
    %198 = vector.broadcast %cst_55 : f32 to vector<2x64xf32>
    %199 = arith.subf %197, %198 : vector<2x64xf32>
    %200 = vector.extract_strided_slice %192 {offsets = [0, 192], sizes = [2, 64], strides = [1, 1]} : vector<2x256xf32> to vector<2x64xf32>
    %201 = arith.mulf %194, %182 : vector<2x64xf32>
    %202 = arith.mulf %193, %199 : vector<2x64xf32>
    %203 = arith.addf %201, %202 : vector<2x64xf32>
    %204 = math.tanh %203 : vector<2x64xf32>
    %205 = arith.mulf %200, %204 : vector<2x64xf32>
    %206 = vector.extract_strided_slice %205 {offsets = [0, 32], sizes = [2, 32], strides = [1, 1]} : vector<2x64xf32> to vector<2x32xf32>
    %c0_56 = arith.constant 0 : index
    %c0_57 = arith.constant 0 : index
    %207 = vector.load %arg2[%c0_56, %c0_57] : memref<176x256xf32, #tpu.memory_space<vmem>>, vector<32x256xf32>
    %c32_58 = arith.constant 32 : index
    %c0_59 = arith.constant 0 : index
    %208 = vector.load %arg2[%c32_58, %c0_59] : memref<176x256xf32, #tpu.memory_space<vmem>>, vector<1x256xf32>
    %c40 = arith.constant 40 : index
    %c0_60 = arith.constant 0 : index
    %209 = vector.load %arg2[%c40, %c0_60] : memref<176x256xf32, #tpu.memory_space<vmem>>, vector<128x256xf32>
    %c168 = arith.constant 168 : index
    %c0_61 = arith.constant 0 : index
    %210 = vector.load %arg2[%c168, %c0_61] : memref<176x256xf32, #tpu.memory_space<vmem>>, vector<1x128xf32>
    %cst_62 = arith.constant dense<0.000000e+00> : vector<2x256xf32>
    %211 = tpu.matmul %206, %207, %cst_62 {dimension_numbers = #tpu.dot_dimension_numbers<[1], [0], [0], [1], [0, 0, 1, 1], [], []>} : vector<2x32xf32>, vector<32x256xf32>, vector<2x256xf32> -> vector<2x256xf32>
    %212 = vector.broadcast %208 : vector<1x256xf32> to vector<2x256xf32>
    %213 = arith.addf %211, %212 : vector<2x256xf32>
    %cst_63 = arith.constant 0.000000e+00 : f32
    %214 = vector.broadcast %cst_63 : f32 to vector<2x256xf32>
    %215 = arith.maximumf %213, %214 : vector<2x256xf32>
    %216 = vector.extract_strided_slice %215 {offsets = [0, 0], sizes = [2, 128], strides = [1, 1]} : vector<2x256xf32> to vector<2x128xf32>
    %217 = vector.extract_strided_slice %209 {offsets = [0, 0], sizes = [128, 128], strides = [1, 1]} : vector<128x256xf32> to vector<128x128xf32>
    %cst_64 = arith.constant dense<0.000000e+00> : vector<2x128xf32>
    %218 = tpu.matmul %216, %217, %cst_64 {dimension_numbers = #tpu.dot_dimension_numbers<[1], [0], [0], [1], [0, 0, 1, 1], [], []>} : vector<2x128xf32>, vector<128x128xf32>, vector<2x128xf32> -> vector<2x128xf32>
    %219 = vector.extract_strided_slice %215 {offsets = [0, 128], sizes = [2, 128], strides = [1, 1]} : vector<2x256xf32> to vector<2x128xf32>
    %220 = vector.extract_strided_slice %209 {offsets = [0, 128], sizes = [128, 128], strides = [1, 1]} : vector<128x256xf32> to vector<128x128xf32>
    %cst_65 = arith.constant dense<0.000000e+00> : vector<2x128xf32>
    %221 = tpu.matmul %219, %220, %cst_65 {dimension_numbers = #tpu.dot_dimension_numbers<[1], [0], [0], [1], [0, 0, 1, 1], [], []>} : vector<2x128xf32>, vector<128x128xf32>, vector<2x128xf32> -> vector<2x128xf32>
    %222 = arith.addf %218, %221 : vector<2x128xf32>
    %223 = vector.broadcast %210 : vector<1x128xf32> to vector<2x128xf32>
    %224 = arith.addf %222, %223 : vector<2x128xf32>
    %225 = tpu.iota {dimensions = array<i32: 1>} : vector<2x128xi32>
    %c4_i32 = arith.constant 4 : i32
    %226 = vector.broadcast %c4_i32 : i32 to vector<2x128xi32>
    %227 = arith.cmpi slt, %225, %226 : vector<2x128xi32>
    %228 = math.tanh %224 : vector<2x128xf32>
    %229 = arith.select %227, %228, %224 : vector<2x128xi1>, vector<2x128xf32>
    %c0_66 = arith.constant 0 : index
    %c0_67 = arith.constant 0 : index
    %230 = vector.load %arg3[%c0_66, %c0_67] : memref<2x128xf32, #tpu.memory_space<vmem>>, vector<2x128xf32>
    tpu.vector_store %arg3[%c0_66, %c0_67], %229 {strides = array<i32>} : memref<2x128xf32, #tpu.memory_space<vmem>>, vector<2x128xf32>,
    return
  }
}

</mosaic_0001>

<llo_original>
// kernel: lstm_memory_optimizer_forward.1
$region0: #{lstm_memory_optimizer_forward.1}
  #allocation0 [shape = 'u32[]', space=smem, size = 0x4, offset = 0x4, fixed_abs, tag = 'smem constant byte address 0x4 - core index']
  #allocation1 [shape = 'u32[144,128]{1,0:T(1,128)}', space=vmem, size = 0x12000, scoped, tag = 'internal scratch']
  #allocation2 [shape = 'f32[16,256]{1,0:T(8,128)}', space=vmem, size = 0x4000, scoped, tag = 'scratch operand']
  %s0 = inlined_call_operand.vmem [shape: f32[16,16], index: 0, kind: input, shape index: {}]
  %s1 = inlined_call_operand.hbm [shape: f32[96,256], index: 1, kind: input, shape index: {}]
  %s2 = inlined_call_operand.hbm [shape: f32[176,256], index: 2, kind: input, shape index: {}]
  %s3 = inlined_call_operand.vmem [shape: f32[2,128], index: 3, kind: output, shape index: {}]
  %s4 = sld [smem:[#allocation0]]
  $region30: #{lstm_memory_optimizer_forward.1} parent=0
    _
  %s6 = ssub.s32 1, %s4
  %s7 = scalar_select 0, %s6, %s4
  $region1: #{lstm_memory_optimizer_forward.1} parent=0
    #allocation3 [shape = 'u8[98304]{0}', space=vmem, size = 0x18000, scoped, tag = 'input window, operand 1, single buffered']
    #allocation4 [shape = 's32[1]{0}', space=sflag, size = 0x4, scoped, tag = 'scoped memory for lstm_memory_optimizer_forward.1']
    #allocation5 [shape = 'u8[180224]{0}', space=vmem, size = 0x2c000, scoped, tag = 'input window, operand 2, single buffered']
    #allocation6 [shape = 's32[1]{0}', space=sflag, size = 0x4, scoped, tag = 'scoped memory for lstm_memory_optimizer_forward.1']
    %8 = vsyncpa [#allocation4], 0
    %9 = vsyncpa [#allocation6], 0
    // Predicated region
    $region2: #{lstm_memory_optimizer_forward.1} parent=1 // pred_check
      _
    $region3: #{lstm_memory_optimizer_forward.1} parent=1 // pred_check_branch
      %11 = sbr.rel (0) target = $region5
    $region4: #{lstm_memory_optimizer_forward.1} parent=1 // pred_region
      _
    $region5: #{lstm_memory_optimizer_forward.1} parent=1 // pred_fallthru
      _
    // Predicated region
    $region6: #{lstm_memory_optimizer_forward.1} parent=1 // pred_check
      _
    $region7: #{lstm_memory_optimizer_forward.1} parent=1 // pred_check_branch
      %13 = sbr.rel (0) target = $region9
    $region8: #{lstm_memory_optimizer_forward.1} parent=1 // pred_region
      %s15 = ssub.s32 3072, 3072
      %16 = vsyncadd [#allocation4], %s15
      %s17 = sshll.u32 [#allocation3], 4
      %s18 = int_to_ptr.vmem [resolvable:$true] %s17
      %23 = dma.hbm_to_vmem [thread:$0]  %s1, 3072, %s18, [#allocation4], 256, 256, 16
    $region9: #{lstm_memory_optimizer_forward.1} parent=1 // pred_fallthru
      _
    // Predicated region
    $region10: #{lstm_memory_optimizer_forward.1} parent=1 // pred_check
      _
    $region11: #{lstm_memory_optimizer_forward.1} parent=1 // pred_check_branch
      %25 = sbr.rel (0) target = $region13
    $region12: #{lstm_memory_optimizer_forward.1} parent=1 // pred_region
      %s27 = ssub.s32 5632, 5632
      %28 = vsyncadd [#allocation6], %s27
      %s29 = sshll.u32 [#allocation5], 4
      %s30 = int_to_ptr.vmem [resolvable:$true] %s29
      %35 = dma.hbm_to_vmem [thread:$0]  %s2, 5632, %s30, [#allocation6], 256, 256, 16
    $region13: #{lstm_memory_optimizer_forward.1} parent=1 // pred_fallthru
      _
    // Predicated region
    $region14: #{lstm_memory_optimizer_forward.1} parent=1 // pred_check
      _
    $region15: #{lstm_memory_optimizer_forward.1} parent=1 // pred_check_branch
      %37 = sbr.rel (0) target = $region17
    $region16: #{lstm_memory_optimizer_forward.1} parent=1 // pred_region
      %38 = dma.done [#allocation4], 3072
    $region17: #{lstm_memory_optimizer_forward.1} parent=1 // pred_fallthru
      _
    // Predicated region
    $region18: #{lstm_memory_optimizer_forward.1} parent=1 // pred_check
      _
    $region19: #{lstm_memory_optimizer_forward.1} parent=1 // pred_check_branch
      %40 = sbr.rel (0) target = $region21
    $region20: #{lstm_memory_optimizer_forward.1} parent=1 // pred_region
      %41 = dma.done [#allocation6], 5632
    $region21: #{lstm_memory_optimizer_forward.1} parent=1 // pred_fallthru
      _
    %v42 = vld [vmem:[#allocation3] sm:$0xff]
    %v43 = vld [vmem:[#allocation3 + $0x8] sm:$0xff]
    %v44 = vld [vmem:[#allocation3 + $0x10] sm:$0xff]
    %v45 = vld [vmem:[#allocation3 + $0x18] sm:$0xff]
    %s46 = scalar_lea.vmem [#allocation3], 32
    %v47 = vld [vmem:[%s46] ss:$8 sm:$0x3]
    %v48 = vld [vmem:[%s0] sm:$0xff]
    %v49 = vld [vmem:[%s0 + $0x8] sm:$0xff]
    %v51 = vlaneseq
    %v52 = vshrl.u32 %v51, 7
    %v53 = vsub.s32 0, %v52
    %v54 = vrot.slane %v47, %v53
    %v55 = vlaneseq
    %v56 = vshrl.u32 %v55, 7
    %v57 = vsub.s32 1, %v56
    %v58 = vrot.slane %v47, %v57
    %vm61 = vcmask 130048
    %v63 = vsel %vm61, %v48, 0
    %v66 = vsel %vm61, %v49, 0
    %68 = vmatprep.subr.mxu0 0.0
    %69 = vmatpush1.msra.mxu0 0.0
    %70 = vmatprep.subr.mxu0 0.0
    %71 = vmatpush1.msra.mxu0 0.0
    %72 = vmatprep.subr.mxu0 0.0
    %73 = vmatpush1.msra.mxu0 0.0
    %74 = vmatprep.subr.mxu0 0.0
    %75 = vmatpush1.msra.mxu0 0.0
    %76 = vmatprep.subr.mxu0 0.0
    %77 = vmatpush1.msra.mxu0 0.0
    %78 = vmatprep.subr.mxu0 0.0
    %79 = vmatpush1.msra.mxu0 0.0
    %80 = vmatprep.subr.mxu0 0.0
    %81 = vmatpush1.msra.mxu0 0.0
    %82 = vmatprep.subr.mxu0 0.0
    %83 = vmatpush1.msra.mxu0 0.0
    %84 = vmatprep.subr.mxu0 0.0
    %85 = vmatpush1.msra.mxu0 0.0
    %86 = vmatprep.subr.mxu0 0.0
    %87 = vmatpush1.msra.mxu0 0.0
    %88 = vmatprep.subr.mxu0 0.0
    %89 = vmatpush1.msra.mxu0 0.0
    %90 = vmatprep.subr.mxu0 0.0
    %91 = vmatpush1.msra.mxu0 0.0
    %92 = vmatprep.subr.mxu0 0.0
    %93 = vmatpush1.msra.mxu0 0.0
    %94 = vmatprep.subr.mxu0 0.0
    %95 = vmatpush1.msra.mxu0 0.0
    %96 = vmatprep.subr.mxu0 %v45
    %97 = vmatpush1.msra.mxu0 %v44
    %98 = vmatprep.subr.mxu0 %v43
    %99 = vmatpush1.msra.mxu0 %v42
    %100 = vmatprep.subr.mxu0 0.0
    %101 = vmatpush2.msra.mxu0 0.0
    %102 = vmatprep.subr.mxu0 0.0
    %103 = vmatpush2.msra.mxu0 0.0
    %104 = vmatprep.subr.mxu0 0.0
    %105 = vmatpush2.msra.mxu0 0.0
    %106 = vmatprep.subr.mxu0 0.0
    %107 = vmatpush2.msra.mxu0 0.0
    %108 = vmatprep.subr.mxu0 0.0
    %109 = vmatpush2.msra.mxu0 0.0
    %110 = vmatprep.subr.mxu0 0.0
    %111 = vmatpush2.msra.mxu0 0.0
    %112 = vmatprep.subr.mxu0 0.0
    %113 = vmatpush2.msra.mxu0 0.0
    %114 = vmatprep.subr.mxu0 0.0
    %115 = vmatpush2.msra.mxu0 0.0
    %116 = vmatprep.subr.mxu0 0.0
    %117 = vmatpush2.msra.mxu0 0.0
    %118 = vmatprep.subr.mxu0 0.0
    %119 = vmatpush2.msra.mxu0 0.0
    %120 = vmatprep.subr.mxu0 0.0
    %121 = vmatpush2.msra.mxu0 0.0
    %122 = vmatprep.subr.mxu0 0.0
    %123 = vmatpush2.msra.mxu0 0.0
    %124 = vmatprep.subr.mxu0 0.0
    %125 = vmatpush2.msra.mxu0 0.0
    %126 = vmatprep.subr.mxu0 0.0
    %127 = vmatpush2.msra.mxu0 0.0
    %128 = vmatprep.subr.mxu0 0.0
    %129 = vmatpush2.msra.mxu0 0.0
    %130 = vmatprep.subr.mxu0 0.0
    %131 = vmatpush2.msra.mxu0 0.0
    %132 = vmatprep.mubr.f32.mxu0 0.0
    %133 = vmatmul.mubr.f32.gmra.mxu0 %v63
    %v134 = vpop.f32.mrf.mxu0
    %v135 = vadd.f32 %v54, %v134
    %v136 = vpop.f32.mrf.mxu0
    %v137 = vadd.f32 %v58, %v136
    %138 = vmatprep.mubr.f32.mxu0 0.0
    %139 = vmatmul.mubr.f32.gmra.mxu0 %v66
    %v140 = vpop.f32.mrf.mxu0
    %v141 = vadd.f32 %v54, %v140
    %v142 = vpop.f32.mrf.mxu0
    %v143 = vadd.f32 %v58, %v142
    %144 = vdwg.mxu0
    %145 = vst [vmem:[#allocation2] sm:$0xff] %v135
    %146 = vst [vmem:[#allocation2 + $0x8] sm:$0xff] %v137
    %147 = vst [vmem:[#allocation2 + $0x10] sm:$0xff] %v141
    %148 = vst [vmem:[#allocation2 + $0x18] sm:$0xff] %v143
    %v149 = vld [vmem:[#allocation3 + $0x40] sm:$0xff]
    %v150 = vld [vmem:[#allocation3 + $0x48] sm:$0xff]
    %v151 = vld [vmem:[#allocation3 + $0x50] sm:$0xff]
    %v152 = vld [vmem:[#allocation3 + $0x58] sm:$0xff]
    %v153 = vld [vmem:[#allocation3 + $0x60] sm:$0xff]
    %v154 = vld [vmem:[#allocation3 + $0x68] sm:$0xff]
    %v155 = vld [vmem:[#allocation3 + $0x70] sm:$0xff]
    %v156 = vld [vmem:[#allocation3 + $0x78] sm:$0xff]
    %v157 = vld [vmem:[#allocation3 + $0x80] sm:$0xff]
    %v158 = vld [vmem:[#allocation3 + $0x88] sm:$0xff]
    %v159 = vld [vmem:[#allocation3 + $0x90] sm:$0xff]
    %v160 = vld [vmem:[#allocation3 + $0x98] sm:$0xff]
    %v161 = vld [vmem:[#allocation3 + $0xa0] sm:$0xff]
    %v162 = vld [vmem:[#allocation3 + $0xa8] sm:$0xff]
    %v163 = vld [vmem:[#allocation3 + $0xb0] sm:$0xff]
    %v164 = vld [vmem:[#allocation3 + $0xb8] sm:$0xff]
    %s165 = scalar_lea.vmem [#allocation3], 48
    %v166 = vld [vmem:[%s165] ss:$8 sm:$0x3]
    %v167 = vlaneseq
    %v168 = vand.u32 %v167, 127
    %v169 = vld [vmem:[#allocation2] sm:$0x3]
    %v170 = vld [vmem:[#allocation2 + $0x8] sm:$0x3]
    %v171 = vxor.u32 %v169, 2147483648
    %v172 = vxor.u32 %v170, 2147483648
    %v173 = vmul.f32 %v171, 1.442695
    %v174 = vpow.pop %v173
    %v175 = vmul.f32 %v172, 1.442695
    %v176 = vpow.pop %v175
    %v177 = vadd.f32 %v174, 1.0
    %v178 = vadd.f32 %v176, 1.0
    %v179 = vrcp.pop %v177
    %v180 = vmul.f32 1.0, %v179
    %v181 = vrcp.pop %v178
    %v182 = vmul.f32 1.0, %v181
    %v183 = vmul.f32 %v182, 2.0
    %v184 = vsub.f32 %v183, 1.0
    %v185 = vmul.f32 %v180, 0.0
    %v186 = vmul.f32 %v180, %v184
    %188 = vrot.lane.b32.xlu0 %v186, 64
    %v189 = vpop.permute.xlu0 %188
    %v191 = vadd.f32 %v185, %v189
    %v192 = vtanh.pop %v191
    %v193 = vmul.f32 %v182, %v192
    %vm194 = vcmp.lt.s32.totalorder %v168, 32
    %196 = vrot.lane.b32.xlu0 %v193, 64
    %v197 = vpop.permute.xlu0 %196
    %v199 = vsel %vm194, %v197, 0.0
    %201 = vrot.lane.b32.xlu0 %v191, 64
    %v202 = vpop.permute.xlu0 %201
    %v204 = vsel %vm194, %v202, 0.0
    %v205 = vld [vmem:[#allocation2] sm:$0xc]
    %v206 = vld [vmem:[#allocation2 + $0x8] sm:$0xc]
    %v209 = vrot.slane %v205, 2
    %v210 = vrot.slane %v206, 2
    %vm213 = vcmask 523264
    %v215 = vsel %vm213, %v199, 0
    %217 = vmatprep.subr.mxu0 0.0
    %218 = vmatpush1.msra.mxu0 0.0
    %219 = vmatprep.subr.mxu0 0.0
    %220 = vmatpush1.msra.mxu0 0.0
    %221 = vmatprep.subr.mxu0 0.0
    %222 = vmatpush1.msra.mxu0 0.0
    %223 = vmatprep.subr.mxu0 0.0
    %224 = vmatpush1.msra.mxu0 0.0
    %225 = vmatprep.subr.mxu0 0.0
    %226 = vmatpush1.msra.mxu0 0.0
    %227 = vmatprep.subr.mxu0 0.0
    %228 = vmatpush1.msra.mxu0 0.0
    %229 = vmatprep.subr.mxu0 0.0
    %230 = vmatpush1.msra.mxu0 0.0
    %231 = vmatprep.subr.mxu0 0.0
    %232 = vmatpush1.msra.mxu0 0.0
    %233 = vmatprep.subr.mxu0 %v164
    %234 = vmatpush1.msra.mxu0 %v163
    %235 = vmatprep.subr.mxu0 %v162
    %236 = vmatpush1.msra.mxu0 %v161
    %237 = vmatprep.subr.mxu0 %v160
    %238 = vmatpush1.msra.mxu0 %v159
    %239 = vmatprep.subr.mxu0 %v158
    %240 = vmatpush1.msra.mxu0 %v157
    %241 = vmatprep.subr.mxu0 %v156
    %242 = vmatpush1.msra.mxu0 %v155
    %243 = vmatprep.subr.mxu0 %v154
    %244 = vmatpush1.msra.mxu0 %v153
    %245 = vmatprep.subr.mxu0 %v152
    %246 = vmatpush1.msra.mxu0 %v151
    %247 = vmatprep.subr.mxu0 %v150
    %248 = vmatpush1.msra.mxu0 %v149
    %249 = vmatprep.subr.mxu0 0.0
    %250 = vmatpush2.msra.mxu0 0.0
    %251 = vmatprep.subr.mxu0 0.0
    %252 = vmatpush2.msra.mxu0 0.0
    %253 = vmatprep.subr.mxu0 0.0
    %254 = vmatpush2.msra.mxu0 0.0
    %255 = vmatprep.subr.mxu0 0.0
    %256 = vmatpush2.msra.mxu0 0.0
    %257 = vmatprep.subr.mxu0 0.0
    %258 = vmatpush2.msra.mxu0 0.0
    %259 = vmatprep.subr.mxu0 0.0
    %260 = vmatpush2.msra.mxu0 0.0
    %261 = vmatprep.subr.mxu0 0.0
    %262 = vmatpush2.msra.mxu0 0.0
    %263 = vmatprep.subr.mxu0 0.0
    %264 = vmatpush2.msra.mxu0 0.0
    %265 = vmatprep.subr.mxu0 0.0
    %266 = vmatpush2.msra.mxu0 0.0
    %267 = vmatprep.subr.mxu0 0.0
    %268 = vmatpush2.msra.mxu0 0.0
    %269 = vmatprep.subr.mxu0 0.0
    %270 = vmatpush2.msra.mxu0 0.0
    %271 = vmatprep.subr.mxu0 0.0
    %272 = vmatpush2.msra.mxu0 0.0
    %273 = vmatprep.subr.mxu0 0.0
    %274 = vmatpush2.msra.mxu0 0.0
    %275 = vmatprep.subr.mxu0 0.0
    %276 = vmatpush2.msra.mxu0 0.0
    %277 = vmatprep.subr.mxu0 0.0
    %278 = vmatpush2.msra.mxu0 0.0
    %279 = vmatprep.subr.mxu0 0.0
    %280 = vmatpush2.msra.mxu0 0.0
    %281 = vmatprep.mubr.f32.mxu0 0.0
    %282 = vmatmul.mubr.f32.gmra.mxu0 %v215
    %v283 = vpop.f32.mrf.mxu0
    %v284 = vadd.f32 %v209, %v283
    %v285 = vpop.f32.mrf.mxu0
    %v286 = vadd.f32 %v210, %v285
    %287 = vdwg.mxu0
    %v288 = vxor.u32 %v284, 2147483648
    %v289 = vxor.u32 %v286, 2147483648
    %v290 = vmul.f32 %v288, 1.442695
    %v291 = vpow.pop %v290
    %v292 = vmul.f32 %v289, 1.442695
    %v293 = vpow.pop %v292
    %v294 = vadd.f32 %v291, 1.0
    %v295 = vadd.f32 %v293, 1.0
    %v296 = vrcp.pop %v294
    %v297 = vmul.f32 1.0, %v296
    %v298 = vrcp.pop %v295
    %v299 = vmul.f32 1.0, %v298
    %v300 = vmul.f32 %v299, 2.0
    %v301 = vsub.f32 %v300, 1.0
    %303 = vrot.lane.b32.xlu0 %v204, 64
    %v304 = vpop.permute.xlu0 %303
    %v306 = vmul.f32 %v297, %v304
    %v307 = vmul.f32 %v297, %v301
    %309 = vrot.lane.b32.xlu0 %v307, 64
    %v310 = vpop.permute.xlu0 %309
    %v312 = vadd.f32 %v306, %v310
    %v313 = vtanh.pop %v312
    %v314 = vmul.f32 %v299, %v313
    %v315 = vld [vmem:[#allocation2] sm:$0x30]
    %v316 = vld [vmem:[#allocation2 + $0x8] sm:$0x30]
    %318 = vrot.lane.b32.xlu0 %v314, 64
    %v319 = vpop.permute.xlu0 %318
    %v322 = vrot.slane %v315, 4
    %v323 = vrot.slane %v316, 4
    %v326 = vsel %vm213, %v319, 0
    %328 = vmatprep.subr.mxu0 0.0
    %329 = vmatpush1.msra.mxu0 0.0
    %330 = vmatprep.subr.mxu0 0.0
    %331 = vmatpush1.msra.mxu0 0.0
    %332 = vmatprep.subr.mxu0 0.0
    %333 = vmatpush1.msra.mxu0 0.0
    %334 = vmatprep.subr.mxu0 0.0
    %335 = vmatpush1.msra.mxu0 0.0
    %336 = vmatprep.subr.mxu0 0.0
    %337 = vmatpush1.msra.mxu0 0.0
    %338 = vmatprep.subr.mxu0 0.0
    %339 = vmatpush1.msra.mxu0 0.0
    %340 = vmatprep.subr.mxu0 0.0
    %341 = vmatpush1.msra.mxu0 0.0
    %342 = vmatprep.subr.mxu0 0.0
    %343 = vmatpush1.msra.mxu0 0.0
    %344 = vmatprep.subr.mxu0 %v164
    %345 = vmatpush1.msra.mxu0 %v163
    %346 = vmatprep.subr.mxu0 %v162
    %347 = vmatpush1.msra.mxu0 %v161
    %348 = vmatprep.subr.mxu0 %v160
    %349 = vmatpush1.msra.mxu0 %v159
    %350 = vmatprep.subr.mxu0 %v158
    %351 = vmatpush1.msra.mxu0 %v157
    %352 = vmatprep.subr.mxu0 %v156
    %353 = vmatpush1.msra.mxu0 %v155
    %354 = vmatprep.subr.mxu0 %v154
    %355 = vmatpush1.msra.mxu0 %v153
    %356 = vmatprep.subr.mxu0 %v152
    %357 = vmatpush1.msra.mxu0 %v151
    %358 = vmatprep.subr.mxu0 %v150
    %359 = vmatpush1.msra.mxu0 %v149
    %360 = vmatprep.subr.mxu0 0.0
    %361 = vmatpush2.msra.mxu0 0.0
    %362 = vmatprep.subr.mxu0 0.0
    %363 = vmatpush2.msra.mxu0 0.0
    %364 = vmatprep.subr.mxu0 0.0
    %365 = vmatpush2.msra.mxu0 0.0
    %366 = vmatprep.subr.mxu0 0.0
    %367 = vmatpush2.msra.mxu0 0.0
    %368 = vmatprep.subr.mxu0 0.0
    %369 = vmatpush2.msra.mxu0 0.0
    %370 = vmatprep.subr.mxu0 0.0
    %371 = vmatpush2.msra.mxu0 0.0
    %372 = vmatprep.subr.mxu0 0.0
    %373 = vmatpush2.msra.mxu0 0.0
    %374 = vmatprep.subr.mxu0 0.0
    %375 = vmatpush2.msra.mxu0 0.0
    %376 = vmatprep.subr.mxu0 0.0
    %377 = vmatpush2.msra.mxu0 0.0
    %378 = vmatprep.subr.mxu0 0.0
    %379 = vmatpush2.msra.mxu0 0.0
    %380 = vmatprep.subr.mxu0 0.0
    %381 = vmatpush2.msra.mxu0 0.0
    %382 = vmatprep.subr.mxu0 0.0
    %383 = vmatpush2.msra.mxu0 0.0
    %384 = vmatprep.subr.mxu0 0.0
    %385 = vmatpush2.msra.mxu0 0.0
    %386 = vmatprep.subr.mxu0 0.0
    %387 = vmatpush2.msra.mxu0 0.0
    %388 = vmatprep.subr.mxu0 0.0
    %389 = vmatpush2.msra.mxu0 0.0
    %390 = vmatprep.subr.mxu0 0.0
    %391 = vmatpush2.msra.mxu0 0.0
    %392 = vmatprep.mubr.f32.mxu0 0.0
    %393 = vmatmul.mubr.f32.gmra.mxu0 %v326
    %v394 = vpop.f32.mrf.mxu0
    %v395 = vadd.f32 %v322, %v394
    %v396 = vpop.f32.mrf.mxu0
    %v397 = vadd.f32 %v323, %v396
    %398 = vdwg.mxu0
    %v399 = vxor.u32 %v395, 2147483648
    %v400 = vxor.u32 %v397, 2147483648
    %v401 = vmul.f32 %v399, 1.442695
    %v402 = vpow.pop %v401
    %v403 = vmul.f32 %v400, 1.442695
    %v404 = vpow.pop %v403
    %v405 = vadd.f32 %v402, 1.0
    %v406 = vadd.f32 %v404, 1.0
    %v407 = vrcp.pop %v405
    %v408 = vmul.f32 1.0, %v407
    %v409 = vrcp.pop %v406
    %v410 = vmul.f32 1.0, %v409
    %v411 = vmul.f32 %v410, 2.0
    %v412 = vsub.f32 %v411, 1.0
    %v413 = vmul.f32 %v408, %v312
    %v414 = vmul.f32 %v408, %v412
    %416 = vrot.lane.b32.xlu0 %v414, 64
    %v417 = vpop.permute.xlu0 %416
    %v419 = vadd.f32 %v413, %v417
    %v420 = vtanh.pop %v419
    %v421 = vmul.f32 %v410, %v420
    %v422 = vld [vmem:[#allocation2] sm:$0xc0]
    %v423 = vld [vmem:[#allocation2 + $0x8] sm:$0xc0]
    %425 = vrot.lane.b32.xlu0 %v421, 64
    %v426 = vpop.permute.xlu0 %425
    %v429 = vrot.slane %v422, 6
    %v430 = vrot.slane %v423, 6
    %v433 = vsel %vm213, %v426, 0
    %435 = vmatprep.subr.mxu0 0.0
    %436 = vmatpush1.msra.mxu0 0.0
    %437 = vmatprep.subr.mxu0 0.0
    %438 = vmatpush1.msra.mxu0 0.0
    %439 = vmatprep.subr.mxu0 0.0
    %440 = vmatpush1.msra.mxu0 0.0
    %441 = vmatprep.subr.mxu0 0.0
    %442 = vmatpush1.msra.mxu0 0.0
    %443 = vmatprep.subr.mxu0 0.0
    %444 = vmatpush1.msra.mxu0 0.0
    %445 = vmatprep.subr.mxu0 0.0
    %446 = vmatpush1.msra.mxu0 0.0
    %447 = vmatprep.subr.mxu0 0.0
    %448 = vmatpush1.msra.mxu0 0.0
    %449 = vmatprep.subr.mxu0 0.0
    %450 = vmatpush1.msra.mxu0 0.0
    %451 = vmatprep.subr.mxu0 %v164
    %452 = vmatpush1.msra.mxu0 %v163
    %453 = vmatprep.subr.mxu0 %v162
    %454 = vmatpush1.msra.mxu0 %v161
    %455 = vmatprep.subr.mxu0 %v160
    %456 = vmatpush1.msra.mxu0 %v159
    %457 = vmatprep.subr.mxu0 %v158
    %458 = vmatpush1.msra.mxu0 %v157
    %459 = vmatprep.subr.mxu0 %v156
    %460 = vmatpush1.msra.mxu0 %v155
    %461 = vmatprep.subr.mxu0 %v154
    %462 = vmatpush1.msra.mxu0 %v153
    %463 = vmatprep.subr.mxu0 %v152
    %464 = vmatpush1.msra.mxu0 %v151
    %465 = vmatprep.subr.mxu0 %v150
    %466 = vmatpush1.msra.mxu0 %v149
    %467 = vmatprep.subr.mxu0 0.0
    %468 = vmatpush2.msra.mxu0 0.0
    %469 = vmatprep.subr.mxu0 0.0
    %470 = vmatpush2.msra.mxu0 0.0
    %471 = vmatprep.subr.mxu0 0.0
    %472 = vmatpush2.msra.mxu0 0.0
    %473 = vmatprep.subr.mxu0 0.0
    %474 = vmatpush2.msra.mxu0 0.0
    %475 = vmatprep.subr.mxu0 0.0
    %476 = vmatpush2.msra.mxu0 0.0
    %477 = vmatprep.subr.mxu0 0.0
    %478 = vmatpush2.msra.mxu0 0.0
    %479 = vmatprep.subr.mxu0 0.0
    %480 = vmatpush2.msra.mxu0 0.0
    %481 = vmatprep.subr.mxu0 0.0
    %482 = vmatpush2.msra.mxu0 0.0
    %483 = vmatprep.subr.mxu0 0.0
    %484 = vmatpush2.msra.mxu0 0.0
    %485 = vmatprep.subr.mxu0 0.0
    %486 = vmatpush2.msra.mxu0 0.0
    %487 = vmatprep.subr.mxu0 0.0
    %488 = vmatpush2.msra.mxu0 0.0
    %489 = vmatprep.subr.mxu0 0.0
    %490 = vmatpush2.msra.mxu0 0.0
    %491 = vmatprep.subr.mxu0 0.0
    %492 = vmatpush2.msra.mxu0 0.0
    %493 = vmatprep.subr.mxu0 0.0
    %494 = vmatpush2.msra.mxu0 0.0
    %495 = vmatprep.subr.mxu0 0.0
    %496 = vmatpush2.msra.mxu0 0.0
    %497 = vmatprep.subr.mxu0 0.0
    %498 = vmatpush2.msra.mxu0 0.0
    %499 = vmatprep.mubr.f32.mxu0 0.0
    %500 = vmatmul.mubr.f32.gmra.mxu0 %v433
    %v501 = vpop.f32.mrf.mxu0
    %v502 = vadd.f32 %v429, %v501
    %v503 = vpop.f32.mrf.mxu0
    %v504 = vadd.f32 %v430, %v503
    %505 = vdwg.mxu0
    %v506 = vxor.u32 %v502, 2147483648
    %v507 = vxor.u32 %v504, 2147483648
    %v508 = vmul.f32 %v506, 1.442695
    %v509 = vpow.pop %v508
    %v510 = vmul.f32 %v507, 1.442695
    %v511 = vpow.pop %v510
    %v512 = vadd.f32 %v509, 1.0
    %v513 = vadd.f32 %v511, 1.0
    %v514 = vrcp.pop %v512
    %v515 = vmul.f32 1.0, %v514
    %v516 = vrcp.pop %v513
    %v517 = vmul.f32 1.0, %v516
    %v518 = vmul.f32 %v517, 2.0
    %v519 = vsub.f32 %v518, 1.0
    %v520 = vmul.f32 %v515, %v419
    %v521 = vmul.f32 %v515, %v519
    %523 = vrot.lane.b32.xlu0 %v521, 64
    %v524 = vpop.permute.xlu0 %523
    %v526 = vadd.f32 %v520, %v524
    %v527 = vtanh.pop %v526
    %v528 = vmul.f32 %v517, %v527
    %v529 = vld [vmem:[#allocation2 + $0x10] sm:$0x3]
    %v530 = vld [vmem:[#allocation2 + $0x18] sm:$0x3]
    %532 = vrot.lane.b32.xlu0 %v528, 64
    %v533 = vpop.permute.xlu0 %532
    %v534 = vsel %vm213, %v533, 0
    %536 = vmatprep.subr.mxu0 0.0
    %537 = vmatpush1.msra.mxu0 0.0
    %538 = vmatprep.subr.mxu0 0.0
    %539 = vmatpush1.msra.mxu0 0.0
    %540 = vmatprep.subr.mxu0 0.0
    %541 = vmatpush1.msra.mxu0 0.0
    %542 = vmatprep.subr.mxu0 0.0
    %543 = vmatpush1.msra.mxu0 0.0
    %544 = vmatprep.subr.mxu0 0.0
    %545 = vmatpush1.msra.mxu0 0.0
    %546 = vmatprep.subr.mxu0 0.0
    %547 = vmatpush1.msra.mxu0 0.0
    %548 = vmatprep.subr.mxu0 0.0
    %549 = vmatpush1.msra.mxu0 0.0
    %550 = vmatprep.subr.mxu0 0.0
    %551 = vmatpush1.msra.mxu0 0.0
    %552 = vmatprep.subr.mxu0 %v164
    %553 = vmatpush1.msra.mxu0 %v163
    %554 = vmatprep.subr.mxu0 %v162
    %555 = vmatpush1.msra.mxu0 %v161
    %556 = vmatprep.subr.mxu0 %v160
    %557 = vmatpush1.msra.mxu0 %v159
    %558 = vmatprep.subr.mxu0 %v158
    %559 = vmatpush1.msra.mxu0 %v157
    %560 = vmatprep.subr.mxu0 %v156
    %561 = vmatpush1.msra.mxu0 %v155
    %562 = vmatprep.subr.mxu0 %v154
    %563 = vmatpush1.msra.mxu0 %v153
    %564 = vmatprep.subr.mxu0 %v152
    %565 = vmatpush1.msra.mxu0 %v151
    %566 = vmatprep.subr.mxu0 %v150
    %567 = vmatpush1.msra.mxu0 %v149
    %568 = vmatprep.subr.mxu0 0.0
    %569 = vmatpush2.msra.mxu0 0.0
    %570 = vmatprep.subr.mxu0 0.0
    %571 = vmatpush2.msra.mxu0 0.0
    %572 = vmatprep.subr.mxu0 0.0
    %573 = vmatpush2.msra.mxu0 0.0
    %574 = vmatprep.subr.mxu0 0.0
    %575 = vmatpush2.msra.mxu0 0.0
    %576 = vmatprep.subr.mxu0 0.0
    %577 = vmatpush2.msra.mxu0 0.0
    %578 = vmatprep.subr.mxu0 0.0
    %579 = vmatpush2.msra.mxu0 0.0
    %580 = vmatprep.subr.mxu0 0.0
    %581 = vmatpush2.msra.mxu0 0.0
    %582 = vmatprep.subr.mxu0 0.0
    %583 = vmatpush2.msra.mxu0 0.0
    %584 = vmatprep.subr.mxu0 0.0
    %585 = vmatpush2.msra.mxu0 0.0
    %586 = vmatprep.subr.mxu0 0.0
    %587 = vmatpush2.msra.mxu0 0.0
    %588 = vmatprep.subr.mxu0 0.0
    %589 = vmatpush2.msra.mxu0 0.0
    %590 = vmatprep.subr.mxu0 0.0
    %591 = vmatpush2.msra.mxu0 0.0
    %592 = vmatprep.subr.mxu0 0.0
    %593 = vmatpush2.msra.mxu0 0.0
    %594 = vmatprep.subr.mxu0 0.0
    %595 = vmatpush2.msra.mxu0 0.0
    %596 = vmatprep.subr.mxu0 0.0
    %597 = vmatpush2.msra.mxu0 0.0
    %598 = vmatprep.subr.mxu0 0.0
    %599 = vmatpush2.msra.mxu0 0.0
    %600 = vmatprep.mubr.f32.mxu0 0.0
    %601 = vmatmul.mubr.f32.gmra.mxu0 %v534
    %v602 = vpop.f32.mrf.mxu0
    %v603 = vadd.f32 %v529, %v602
    %v604 = vpop.f32.mrf.mxu0
    %v605 = vadd.f32 %v530, %v604
    %606 = vdwg.mxu0
    %v607 = vxor.u32 %v603, 2147483648
    %v608 = vxor.u32 %v605, 2147483648
    %v609 = vmul.f32 %v607, 1.442695
    %v610 = vpow.pop %v609
    %v611 = vmul.f32 %v608, 1.442695
    %v612 = vpow.pop %v611
    %v613 = vadd.f32 %v610, 1.0
    %v614 = vadd.f32 %v612, 1.0
    %v615 = vrcp.pop %v613
    %v616 = vmul.f32 1.0, %v615
    %v617 = vrcp.pop %v614
    %v618 = vmul.f32 1.0, %v617
    %v619 = vmul.f32 %v618, 2.0
    %v620 = vsub.f32 %v619, 1.0
    %v621 = vmul.f32 %v616, %v526
    %v622 = vmul.f32 %v616, %v620
    %624 = vrot.lane.b32.xlu0 %v622, 64
    %v625 = vpop.permute.xlu0 %624
    %v627 = vadd.f32 %v621, %v625
    %v628 = vtanh.pop %v627
    %v629 = vmul.f32 %v618, %v628
    %v630 = vld [vmem:[#allocation2 + $0x10] sm:$0xc]
    %v631 = vld [vmem:[#allocation2 + $0x18] sm:$0xc]
    %633 = vrot.lane.b32.xlu0 %v629, 64
    %v634 = vpop.permute.xlu0 %633
    %v637 = vrot.slane %v630, 2
    %v638 = vrot.slane %v631, 2
    %v641 = vsel %vm213, %v634, 0
    %643 = vmatprep.subr.mxu0 0.0
    %644 = vmatpush1.msra.mxu0 0.0
    %645 = vmatprep.subr.mxu0 0.0
    %646 = vmatpush1.msra.mxu0 0.0
    %647 = vmatprep.subr.mxu0 0.0
    %648 = vmatpush1.msra.mxu0 0.0
    %649 = vmatprep.subr.mxu0 0.0
    %650 = vmatpush1.msra.mxu0 0.0
    %651 = vmatprep.subr.mxu0 0.0
    %652 = vmatpush1.msra.mxu0 0.0
    %653 = vmatprep.subr.mxu0 0.0
    %654 = vmatpush1.msra.mxu0 0.0
    %655 = vmatprep.subr.mxu0 0.0
    %656 = vmatpush1.msra.mxu0 0.0
    %657 = vmatprep.subr.mxu0 0.0
    %658 = vmatpush1.msra.mxu0 0.0
    %659 = vmatprep.subr.mxu0 %v164
    %660 = vmatpush1.msra.mxu0 %v163
    %661 = vmatprep.subr.mxu0 %v162
    %662 = vmatpush1.msra.mxu0 %v161
    %663 = vmatprep.subr.mxu0 %v160
    %664 = vmatpush1.msra.mxu0 %v159
    %665 = vmatprep.subr.mxu0 %v158
    %666 = vmatpush1.msra.mxu0 %v157
    %667 = vmatprep.subr.mxu0 %v156
    %668 = vmatpush1.msra.mxu0 %v155
    %669 = vmatprep.subr.mxu0 %v154
    %670 = vmatpush1.msra.mxu0 %v153
    %671 = vmatprep.subr.mxu0 %v152
    %672 = vmatpush1.msra.mxu0 %v151
    %673 = vmatprep.subr.mxu0 %v150
    %674 = vmatpush1.msra.mxu0 %v149
    %675 = vmatprep.subr.mxu0 0.0
    %676 = vmatpush2.msra.mxu0 0.0
    %677 = vmatprep.subr.mxu0 0.0
    %678 = vmatpush2.msra.mxu0 0.0
    %679 = vmatprep.subr.mxu0 0.0
    %680 = vmatpush2.msra.mxu0 0.0
    %681 = vmatprep.subr.mxu0 0.0
    %682 = vmatpush2.msra.mxu0 0.0
    %683 = vmatprep.subr.mxu0 0.0
    %684 = vmatpush2.msra.mxu0 0.0
    %685 = vmatprep.subr.mxu0 0.0
    %686 = vmatpush2.msra.mxu0 0.0
    %687 = vmatprep.subr.mxu0 0.0
    %688 = vmatpush2.msra.mxu0 0.0
    %689 = vmatprep.subr.mxu0 0.0
    %690 = vmatpush2.msra.mxu0 0.0
    %691 = vmatprep.subr.mxu0 0.0
    %692 = vmatpush2.msra.mxu0 0.0
    %693 = vmatprep.subr.mxu0 0.0
    %694 = vmatpush2.msra.mxu0 0.0
    %695 = vmatprep.subr.mxu0 0.0
    %696 = vmatpush2.msra.mxu0 0.0
    %697 = vmatprep.subr.mxu0 0.0
    %698 = vmatpush2.msra.mxu0 0.0
    %699 = vmatprep.subr.mxu0 0.0
    %700 = vmatpush2.msra.mxu0 0.0
    %701 = vmatprep.subr.mxu0 0.0
    %702 = vmatpush2.msra.mxu0 0.0
    %703 = vmatprep.subr.mxu0 0.0
    %704 = vmatpush2.msra.mxu0 0.0
    %705 = vmatprep.subr.mxu0 0.0
    %706 = vmatpush2.msra.mxu0 0.0
    %707 = vmatprep.mubr.f32.mxu0 0.0
    %708 = vmatmul.mubr.f32.gmra.mxu0 %v641
    %v709 = vpop.f32.mrf.mxu0
    %v710 = vadd.f32 %v637, %v709
    %v711 = vpop.f32.mrf.mxu0
    %v712 = vadd.f32 %v638, %v711
    %713 = vdwg.mxu0
    %v714 = vxor.u32 %v710, 2147483648
    %v715 = vxor.u32 %v712, 2147483648
    %v716 = vmul.f32 %v714, 1.442695
    %v717 = vpow.pop %v716
    %v718 = vmul.f32 %v715, 1.442695
    %v719 = vpow.pop %v718
    %v720 = vadd.f32 %v717, 1.0
    %v721 = vadd.f32 %v719, 1.0
    %v722 = vrcp.pop %v720
    %v723 = vmul.f32 1.0, %v722
    %v724 = vrcp.pop %v721
    %v725 = vmul.f32 1.0, %v724
    %v726 = vmul.f32 %v725, 2.0
    %v727 = vsub.f32 %v726, 1.0
    %v728 = vmul.f32 %v723, %v627
    %v729 = vmul.f32 %v723, %v727
    %731 = vrot.lane.b32.xlu0 %v729, 64
    %v732 = vpop.permute.xlu0 %731
    %v734 = vadd.f32 %v728, %v732
    %v735 = vtanh.pop %v734
    %v736 = vmul.f32 %v725, %v735
    %v737 = vld [vmem:[#allocation2 + $0x10] sm:$0x30]
    %v738 = vld [vmem:[#allocation2 + $0x18] sm:$0x30]
    %740 = vrot.lane.b32.xlu0 %v736, 64
    %v741 = vpop.permute.xlu0 %740
    %v744 = vrot.slane %v737, 4
    %v745 = vrot.slane %v738, 4
    %v748 = vsel %vm213, %v741, 0
    %750 = vmatprep.subr.mxu0 0.0
    %751 = vmatpush1.msra.mxu0 0.0
    %752 = vmatprep.subr.mxu0 0.0
    %753 = vmatpush1.msra.mxu0 0.0
    %754 = vmatprep.subr.mxu0 0.0
    %755 = vmatpush1.msra.mxu0 0.0
    %756 = vmatprep.subr.mxu0 0.0
    %757 = vmatpush1.msra.mxu0 0.0
    %758 = vmatprep.subr.mxu0 0.0
    %759 = vmatpush1.msra.mxu0 0.0
    %760 = vmatprep.subr.mxu0 0.0
    %761 = vmatpush1.msra.mxu0 0.0
    %762 = vmatprep.subr.mxu0 0.0
    %763 = vmatpush1.msra.mxu0 0.0
    %764 = vmatprep.subr.mxu0 0.0
    %765 = vmatpush1.msra.mxu0 0.0
    %766 = vmatprep.subr.mxu0 %v164
    %767 = vmatpush1.msra.mxu0 %v163
    %768 = vmatprep.subr.mxu0 %v162
    %769 = vmatpush1.msra.mxu0 %v161
    %770 = vmatprep.subr.mxu0 %v160
    %771 = vmatpush1.msra.mxu0 %v159
    %772 = vmatprep.subr.mxu0 %v158
    %773 = vmatpush1.msra.mxu0 %v157
    %774 = vmatprep.subr.mxu0 %v156
    %775 = vmatpush1.msra.mxu0 %v155
    %776 = vmatprep.subr.mxu0 %v154
    %777 = vmatpush1.msra.mxu0 %v153
    %778 = vmatprep.subr.mxu0 %v152
    %779 = vmatpush1.msra.mxu0 %v151
    %780 = vmatprep.subr.mxu0 %v150
    %781 = vmatpush1.msra.mxu0 %v149
    %782 = vmatprep.subr.mxu0 0.0
    %783 = vmatpush2.msra.mxu0 0.0
    %784 = vmatprep.subr.mxu0 0.0
    %785 = vmatpush2.msra.mxu0 0.0
    %786 = vmatprep.subr.mxu0 0.0
    %787 = vmatpush2.msra.mxu0 0.0
    %788 = vmatprep.subr.mxu0 0.0
    %789 = vmatpush2.msra.mxu0 0.0
    %790 = vmatprep.subr.mxu0 0.0
    %791 = vmatpush2.msra.mxu0 0.0
    %792 = vmatprep.subr.mxu0 0.0
    %793 = vmatpush2.msra.mxu0 0.0
    %794 = vmatprep.subr.mxu0 0.0
    %795 = vmatpush2.msra.mxu0 0.0
    %796 = vmatprep.subr.mxu0 0.0
    %797 = vmatpush2.msra.mxu0 0.0
    %798 = vmatprep.subr.mxu0 0.0
    %799 = vmatpush2.msra.mxu0 0.0
    %800 = vmatprep.subr.mxu0 0.0
    %801 = vmatpush2.msra.mxu0 0.0
    %802 = vmatprep.subr.mxu0 0.0
    %803 = vmatpush2.msra.mxu0 0.0
    %804 = vmatprep.subr.mxu0 0.0
    %805 = vmatpush2.msra.mxu0 0.0
    %806 = vmatprep.subr.mxu0 0.0
    %807 = vmatpush2.msra.mxu0 0.0
    %808 = vmatprep.subr.mxu0 0.0
    %809 = vmatpush2.msra.mxu0 0.0
    %810 = vmatprep.subr.mxu0 0.0
    %811 = vmatpush2.msra.mxu0 0.0
    %812 = vmatprep.subr.mxu0 0.0
    %813 = vmatpush2.msra.mxu0 0.0
    %814 = vmatprep.mubr.f32.mxu0 0.0
    %815 = vmatmul.mubr.f32.gmra.mxu0 %v748
    %v816 = vpop.f32.mrf.mxu0
    %v817 = vadd.f32 %v744, %v816
    %v818 = vpop.f32.mrf.mxu0
    %v819 = vadd.f32 %v745, %v818
    %820 = vdwg.mxu0
    %v821 = vxor.u32 %v817, 2147483648
    %v822 = vxor.u32 %v819, 2147483648
    %v823 = vmul.f32 %v821, 1.442695
    %v824 = vpow.pop %v823
    %v825 = vmul.f32 %v822, 1.442695
    %v826 = vpow.pop %v825
    %v827 = vadd.f32 %v824, 1.0
    %v828 = vadd.f32 %v826, 1.0
    %v829 = vrcp.pop %v827
    %v830 = vmul.f32 1.0, %v829
    %v831 = vrcp.pop %v828
    %v832 = vmul.f32 1.0, %v831
    %v833 = vmul.f32 %v832, 2.0
    %v834 = vsub.f32 %v833, 1.0
    %v835 = vmul.f32 %v830, %v734
    %v836 = vmul.f32 %v830, %v834
    %838 = vrot.lane.b32.xlu0 %v836, 64
    %v839 = vpop.permute.xlu0 %838
    %v841 = vadd.f32 %v835, %v839
    %v842 = vtanh.pop %v841
    %v843 = vmul.f32 %v832, %v842
    %v844 = vld [vmem:[#allocation2 + $0x10] sm:$0xc0]
    %v845 = vld [vmem:[#allocation2 + $0x18] sm:$0xc0]
    %847 = vrot.lane.b32.xlu0 %v843, 64
    %v848 = vpop.permute.xlu0 %847
    %v851 = vrot.slane %v844, 6
    %v852 = vrot.slane %v845, 6
    %v855 = vsel %vm213, %v848, 0
    %857 = vmatprep.subr.mxu0 0.0
    %858 = vmatpush1.msra.mxu0 0.0
    %859 = vmatprep.subr.mxu0 0.0
    %860 = vmatpush1.msra.mxu0 0.0
    %861 = vmatprep.subr.mxu0 0.0
    %862 = vmatpush1.msra.mxu0 0.0
    %863 = vmatprep.subr.mxu0 0.0
    %864 = vmatpush1.msra.mxu0 0.0
    %865 = vmatprep.subr.mxu0 0.0
    %866 = vmatpush1.msra.mxu0 0.0
    %867 = vmatprep.subr.mxu0 0.0
    %868 = vmatpush1.msra.mxu0 0.0
    %869 = vmatprep.subr.mxu0 0.0
    %870 = vmatpush1.msra.mxu0 0.0
    %871 = vmatprep.subr.mxu0 0.0
    %872 = vmatpush1.msra.mxu0 0.0
    %873 = vmatprep.subr.mxu0 %v164
    %874 = vmatpush1.msra.mxu0 %v163
    %875 = vmatprep.subr.mxu0 %v162
    %876 = vmatpush1.msra.mxu0 %v161
    %877 = vmatprep.subr.mxu0 %v160
    %878 = vmatpush1.msra.mxu0 %v159
    %879 = vmatprep.subr.mxu0 %v158
    %880 = vmatpush1.msra.mxu0 %v157
    %881 = vmatprep.subr.mxu0 %v156
    %882 = vmatpush1.msra.mxu0 %v155
    %883 = vmatprep.subr.mxu0 %v154
    %884 = vmatpush1.msra.mxu0 %v153
    %885 = vmatprep.subr.mxu0 %v152
    %886 = vmatpush1.msra.mxu0 %v151
    %887 = vmatprep.subr.mxu0 %v150
    %888 = vmatpush1.msra.mxu0 %v149
    %889 = vmatprep.subr.mxu0 0.0
    %890 = vmatpush2.msra.mxu0 0.0
    %891 = vmatprep.subr.mxu0 0.0
    %892 = vmatpush2.msra.mxu0 0.0
    %893 = vmatprep.subr.mxu0 0.0
    %894 = vmatpush2.msra.mxu0 0.0
    %895 = vmatprep.subr.mxu0 0.0
    %896 = vmatpush2.msra.mxu0 0.0
    %897 = vmatprep.subr.mxu0 0.0
    %898 = vmatpush2.msra.mxu0 0.0
    %899 = vmatprep.subr.mxu0 0.0
    %900 = vmatpush2.msra.mxu0 0.0
    %901 = vmatprep.subr.mxu0 0.0
    %902 = vmatpush2.msra.mxu0 0.0
    %903 = vmatprep.subr.mxu0 0.0
    %904 = vmatpush2.msra.mxu0 0.0
    %905 = vmatprep.subr.mxu0 0.0
    %906 = vmatpush2.msra.mxu0 0.0
    %907 = vmatprep.subr.mxu0 0.0
    %908 = vmatpush2.msra.mxu0 0.0
    %909 = vmatprep.subr.mxu0 0.0
    %910 = vmatpush2.msra.mxu0 0.0
    %911 = vmatprep.subr.mxu0 0.0
    %912 = vmatpush2.msra.mxu0 0.0
    %913 = vmatprep.subr.mxu0 0.0
    %914 = vmatpush2.msra.mxu0 0.0
    %915 = vmatprep.subr.mxu0 0.0
    %916 = vmatpush2.msra.mxu0 0.0
    %917 = vmatprep.subr.mxu0 0.0
    %918 = vmatpush2.msra.mxu0 0.0
    %919 = vmatprep.subr.mxu0 0.0
    %920 = vmatpush2.msra.mxu0 0.0
    %921 = vmatprep.mubr.f32.mxu0 0.0
    %922 = vmatmul.mubr.f32.gmra.mxu0 %v855
    %v923 = vpop.f32.mrf.mxu0
    %v924 = vadd.f32 %v851, %v923
    %v925 = vpop.f32.mrf.mxu0
    %v926 = vadd.f32 %v852, %v925
    %927 = vdwg.mxu0
    %v928 = vxor.u32 %v924, 2147483648
    %v929 = vxor.u32 %v926, 2147483648
    %v930 = vmul.f32 %v928, 1.442695
    %v931 = vpow.pop %v930
    %v932 = vmul.f32 %v929, 1.442695
    %v933 = vpow.pop %v932
    %v934 = vadd.f32 %v931, 1.0
    %v935 = vadd.f32 %v933, 1.0
    %v936 = vrcp.pop %v934
    %v937 = vmul.f32 1.0, %v936
    %v938 = vrcp.pop %v935
    %v939 = vmul.f32 1.0, %v938
    %v940 = vmul.f32 %v939, 2.0
    %v941 = vsub.f32 %v940, 1.0
    %v942 = vmul.f32 %v937, %v841
    %v943 = vmul.f32 %v937, %v941
    %945 = vrot.lane.b32.xlu0 %v943, 64
    %v946 = vpop.permute.xlu0 %945
    %v948 = vadd.f32 %v942, %v946
    %v949 = vtanh.pop %v948
    %v950 = vmul.f32 %v939, %v949
    %v952 = vlaneseq
    %v953 = vshrl.u32 %v952, 7
    %v954 = vsub.s32 0, %v953
    %v955 = vrot.slane %v166, %v954
    %v956 = vlaneseq
    %v957 = vshrl.u32 %v956, 7
    %v958 = vsub.s32 1, %v957
    %v959 = vrot.slane %v166, %v958
    %963 = vrot.lane.b32.xlu0 %v950, 64
    %v964 = vpop.permute.xlu0 %963
    %v965 = vsel %vm213, %v964, 0
    %967 = vmatprep.subr.mxu0 0.0
    %968 = vmatpush1.msra.mxu0 0.0
    %969 = vmatprep.subr.mxu0 0.0
    %970 = vmatpush1.msra.mxu0 0.0
    %971 = vmatprep.subr.mxu0 0.0
    %972 = vmatpush1.msra.mxu0 0.0
    %973 = vmatprep.subr.mxu0 0.0
    %974 = vmatpush1.msra.mxu0 0.0
    %975 = vmatprep.subr.mxu0 0.0
    %976 = vmatpush1.msra.mxu0 0.0
    %977 = vmatprep.subr.mxu0 0.0
    %978 = vmatpush1.msra.mxu0 0.0
    %979 = vmatprep.subr.mxu0 0.0
    %980 = vmatpush1.msra.mxu0 0.0
    %981 = vmatprep.subr.mxu0 0.0
    %982 = vmatpush1.msra.mxu0 0.0
    %983 = vmatprep.subr.mxu0 %v164
    %984 = vmatpush1.msra.mxu0 %v163
    %985 = vmatprep.subr.mxu0 %v162
    %986 = vmatpush1.msra.mxu0 %v161
    %987 = vmatprep.subr.mxu0 %v160
    %988 = vmatpush1.msra.mxu0 %v159
    %989 = vmatprep.subr.mxu0 %v158
    %990 = vmatpush1.msra.mxu0 %v157
    %991 = vmatprep.subr.mxu0 %v156
    %992 = vmatpush1.msra.mxu0 %v155
    %993 = vmatprep.subr.mxu0 %v154
    %994 = vmatpush1.msra.mxu0 %v153
    %995 = vmatprep.subr.mxu0 %v152
    %996 = vmatpush1.msra.mxu0 %v151
    %997 = vmatprep.subr.mxu0 %v150
    %998 = vmatpush1.msra.mxu0 %v149
    %999 = vmatprep.subr.mxu0 0.0
    %1000 = vmatpush2.msra.mxu0 0.0
    %1001 = vmatprep.subr.mxu0 0.0
    %1002 = vmatpush2.msra.mxu0 0.0
    %1003 = vmatprep.subr.mxu0 0.0
    %1004 = vmatpush2.msra.mxu0 0.0
    %1005 = vmatprep.subr.mxu0 0.0
    %1006 = vmatpush2.msra.mxu0 0.0
    %1007 = vmatprep.subr.mxu0 0.0
    %1008 = vmatpush2.msra.mxu0 0.0
    %1009 = vmatprep.subr.mxu0 0.0
    %1010 = vmatpush2.msra.mxu0 0.0
    %1011 = vmatprep.subr.mxu0 0.0
    %1012 = vmatpush2.msra.mxu0 0.0
    %1013 = vmatprep.subr.mxu0 0.0
    %1014 = vmatpush2.msra.mxu0 0.0
    %1015 = vmatprep.subr.mxu0 0.0
    %1016 = vmatpush2.msra.mxu0 0.0
    %1017 = vmatprep.subr.mxu0 0.0
    %1018 = vmatpush2.msra.mxu0 0.0
    %1019 = vmatprep.subr.mxu0 0.0
    %1020 = vmatpush2.msra.mxu0 0.0
    %1021 = vmatprep.subr.mxu0 0.0
    %1022 = vmatpush2.msra.mxu0 0.0
    %1023 = vmatprep.subr.mxu0 0.0
    %1024 = vmatpush2.msra.mxu0 0.0
    %1025 = vmatprep.subr.mxu0 0.0
    %1026 = vmatpush2.msra.mxu0 0.0
    %1027 = vmatprep.subr.mxu0 0.0
    %1028 = vmatpush2.msra.mxu0 0.0
    %1029 = vmatprep.subr.mxu0 0.0
    %1030 = vmatpush2.msra.mxu0 0.0
    %1031 = vmatprep.mubr.f32.mxu0 0.0
    %1032 = vmatmul.mubr.f32.gmra.mxu0 %v965
    %v1033 = vpop.f32.mrf.mxu0
    %v1034 = vadd.f32 %v955, %v1033
    %v1035 = vpop.f32.mrf.mxu0
    %v1036 = vadd.f32 %v959, %v1035
    %1037 = vdwg.mxu0
    %v1038 = vxor.u32 %v1034, 2147483648
    %v1039 = vxor.u32 %v1036, 2147483648
    %v1040 = vmul.f32 %v1038, 1.442695
    %v1041 = vpow.pop %v1040
    %v1042 = vmul.f32 %v1039, 1.442695
    %v1043 = vpow.pop %v1042
    %v1044 = vadd.f32 %v1041, 1.0
    %v1045 = vadd.f32 %v1043, 1.0
    %v1046 = vrcp.pop %v1044
    %v1047 = vmul.f32 1.0, %v1046
    %v1048 = vrcp.pop %v1045
    %v1049 = vmul.f32 1.0, %v1048
    %v1050 = vmul.f32 %v1049, 2.0
    %v1051 = vsub.f32 %v1050, 1.0
    %v1052 = vmul.f32 %v1047, %v948
    %v1053 = vmul.f32 %v1047, %v1051
    %1055 = vrot.lane.b32.xlu0 %v1053, 64
    %v1056 = vpop.permute.xlu0 %1055
    %v1058 = vadd.f32 %v1052, %v1056
    %v1059 = vtanh.pop %v1058
    %v1060 = vmul.f32 %v1049, %v1059
    %v1061 = vld [vmem:[#allocation5] sm:$0xff]
    %v1062 = vld [vmem:[#allocation5 + $0x8] sm:$0xff]
    %v1063 = vld [vmem:[#allocation5 + $0x10] sm:$0xff]
    %v1064 = vld [vmem:[#allocation5 + $0x18] sm:$0xff]
    %v1065 = vld [vmem:[#allocation5 + $0x20] sm:$0xff]
    %v1066 = vld [vmem:[#allocation5 + $0x28] sm:$0xff]
    %v1067 = vld [vmem:[#allocation5 + $0x30] sm:$0xff]
    %v1068 = vld [vmem:[#allocation5 + $0x38] sm:$0xff]
    %s1069 = scalar_lea.vmem [#allocation5], 64
    %v1070 = vld [vmem:[%s1069] ss:$8 sm:$0x3]
    %v1071 = vld [vmem:[#allocation5 + $0x50] sm:$0xff]
    %v1072 = vld [vmem:[#allocation5 + $0x58] sm:$0xff]
    %v1073 = vld [vmem:[#allocation5 + $0x60] sm:$0xff]
    %v1074 = vld [vmem:[#allocation5 + $0x68] sm:$0xff]
    %v1075 = vld [vmem:[#allocation5 + $0x70] sm:$0xff]
    %v1076 = vld [vmem:[#allocation5 + $0x78] sm:$0xff]
    %v1077 = vld [vmem:[#allocation5 + $0x80] sm:$0xff]
    %v1078 = vld [vmem:[#allocation5 + $0x88] sm:$0xff]
    %v1079 = vld [vmem:[#allocation5 + $0x90] sm:$0xff]
    %v1080 = vld [vmem:[#allocation5 + $0x98] sm:$0xff]
    %v1081 = vld [vmem:[#allocation5 + $0xa0] sm:$0xff]
    %v1082 = vld [vmem:[#allocation5 + $0xa8] sm:$0xff]
    %v1083 = vld [vmem:[#allocation5 + $0xb0] sm:$0xff]
    %v1084 = vld [vmem:[#allocation5 + $0xb8] sm:$0xff]
    %v1085 = vld [vmem:[#allocation5 + $0xc0] sm:$0xff]
    %v1086 = vld [vmem:[#allocation5 + $0xc8] sm:$0xff]
    %v1087 = vld [vmem:[#allocation5 + $0xd0] sm:$0xff]
    %v1088 = vld [vmem:[#allocation5 + $0xd8] sm:$0xff]
    %v1089 = vld [vmem:[#allocation5 + $0xe0] sm:$0xff]
    %v1090 = vld [vmem:[#allocation5 + $0xe8] sm:$0xff]
    %v1091 = vld [vmem:[#allocation5 + $0xf0] sm:$0xff]
    %v1092 = vld [vmem:[#allocation5 + $0xf8] sm:$0xff]
    %v1093 = vld [vmem:[#allocation5 + $0x100] sm:$0xff]
    %v1094 = vld [vmem:[#allocation5 + $0x108] sm:$0xff]
    %v1095 = vld [vmem:[#allocation5 + $0x110] sm:$0xff]
    %v1096 = vld [vmem:[#allocation5 + $0x118] sm:$0xff]
    %v1097 = vld [vmem:[#allocation5 + $0x120] sm:$0xff]
    %v1098 = vld [vmem:[#allocation5 + $0x128] sm:$0xff]
    %v1099 = vld [vmem:[#allocation5 + $0x130] sm:$0xff]
    %v1100 = vld [vmem:[#allocation5 + $0x138] sm:$0xff]
    %v1101 = vld [vmem:[#allocation5 + $0x140] sm:$0xff]
    %v1102 = vld [vmem:[#allocation5 + $0x148] sm:$0xff]
    %v1103 = vld [vmem:[#allocation5 + $0x150] ss:$0 sm:$0xff]
    %v1105 = vlaneseq
    %v1106 = vshrl.u32 %v1105, 7
    %v1107 = vsub.s32 0, %v1106
    %v1108 = vrot.slane %v1070, %v1107
    %v1109 = vlaneseq
    %v1110 = vshrl.u32 %v1109, 7
    %v1111 = vsub.s32 1, %v1110
    %v1112 = vrot.slane %v1070, %v1111
    %1116 = vrot.lane.b32.xlu0 %v1060, 32
    %v1117 = vpop.permute.xlu0 %1116
    %vm1118 = vcmask 261120
    %v1119 = vsel %vm1118, %v1117, 0
    %1121 = vmatprep.subr.mxu0 0.0
    %1122 = vmatpush1.msra.mxu0 0.0
    %1123 = vmatprep.subr.mxu0 0.0
    %1124 = vmatpush1.msra.mxu0 0.0
    %1125 = vmatprep.subr.mxu0 0.0
    %1126 = vmatpush1.msra.mxu0 0.0
    %1127 = vmatprep.subr.mxu0 0.0
    %1128 = vmatpush1.msra.mxu0 0.0
    %1129 = vmatprep.subr.mxu0 0.0
    %1130 = vmatpush1.msra.mxu0 0.0
    %1131 = vmatprep.subr.mxu0 0.0
    %1132 = vmatpush1.msra.mxu0 0.0
    %1133 = vmatprep.subr.mxu0 0.0
    %1134 = vmatpush1.msra.mxu0 0.0
    %1135 = vmatprep.subr.mxu0 0.0
    %1136 = vmatpush1.msra.mxu0 0.0
    %1137 = vmatprep.subr.mxu0 0.0
    %1138 = vmatpush1.msra.mxu0 0.0
    %1139 = vmatprep.subr.mxu0 0.0
    %1140 = vmatpush1.msra.mxu0 0.0
    %1141 = vmatprep.subr.mxu0 0.0
    %1142 = vmatpush1.msra.mxu0 0.0
    %1143 = vmatprep.subr.mxu0 0.0
    %1144 = vmatpush1.msra.mxu0 0.0
    %1145 = vmatprep.subr.mxu0 %v1068
    %1146 = vmatpush1.msra.mxu0 %v1067
    %1147 = vmatprep.subr.mxu0 %v1066
    %1148 = vmatpush1.msra.mxu0 %v1065
    %1149 = vmatprep.subr.mxu0 %v1064
    %1150 = vmatpush1.msra.mxu0 %v1063
    %1151 = vmatprep.subr.mxu0 %v1062
    %1152 = vmatpush1.msra.mxu0 %v1061
    %1153 = vmatprep.subr.mxu0 0.0
    %1154 = vmatpush2.msra.mxu0 0.0
    %1155 = vmatprep.subr.mxu0 0.0
    %1156 = vmatpush2.msra.mxu0 0.0
    %1157 = vmatprep.subr.mxu0 0.0
    %1158 = vmatpush2.msra.mxu0 0.0
    %1159 = vmatprep.subr.mxu0 0.0
    %1160 = vmatpush2.msra.mxu0 0.0
    %1161 = vmatprep.subr.mxu0 0.0
    %1162 = vmatpush2.msra.mxu0 0.0
    %1163 = vmatprep.subr.mxu0 0.0
    %1164 = vmatpush2.msra.mxu0 0.0
    %1165 = vmatprep.subr.mxu0 0.0
    %1166 = vmatpush2.msra.mxu0 0.0
    %1167 = vmatprep.subr.mxu0 0.0
    %1168 = vmatpush2.msra.mxu0 0.0
    %1169 = vmatprep.subr.mxu0 0.0
    %1170 = vmatpush2.msra.mxu0 0.0
    %1171 = vmatprep.subr.mxu0 0.0
    %1172 = vmatpush2.msra.mxu0 0.0
    %1173 = vmatprep.subr.mxu0 0.0
    %1174 = vmatpush2.msra.mxu0 0.0
    %1175 = vmatprep.subr.mxu0 0.0
    %1176 = vmatpush2.msra.mxu0 0.0
    %1177 = vmatprep.subr.mxu0 0.0
    %1178 = vmatpush2.msra.mxu0 0.0
    %1179 = vmatprep.subr.mxu0 0.0
    %1180 = vmatpush2.msra.mxu0 0.0
    %1181 = vmatprep.subr.mxu0 0.0
    %1182 = vmatpush2.msra.mxu0 0.0
    %1183 = vmatprep.subr.mxu0 0.0
    %1184 = vmatpush2.msra.mxu0 0.0
    %1185 = vmatprep.mubr.f32.mxu0 0.0
    %1186 = vmatmul.mubr.f32.gmra.mxu0 %v1119
    %v1187 = vpop.f32.mrf.mxu0
    %v1188 = vadd.f32 %v1108, %v1187
    %v1189 = vpop.f32.mrf.mxu0
    %v1190 = vadd.f32 %v1112, %v1189
    %1191 = vdwg.mxu0
    %v1192 = vmax.f32 %v1188, 0.0
    %v1193 = vmax.f32 %v1190, 0.0
    %1194 = vmatprep.subr.mxu0 0.0
    %1195 = vmatpush1.msra.mxu0 %v1102
    %1196 = vmatprep.subr.mxu0 0.0
    %1197 = vmatpush1.msra.mxu0 %v1100
    %1198 = vmatprep.subr.mxu0 0.0
    %1199 = vmatpush1.msra.mxu0 %v1098
    %1200 = vmatprep.subr.mxu0 0.0
    %1201 = vmatpush1.msra.mxu0 %v1096
    %1202 = vmatprep.subr.mxu0 0.0
    %1203 = vmatpush1.msra.mxu0 %v1094
    %1204 = vmatprep.subr.mxu0 0.0
    %1205 = vmatpush1.msra.mxu0 %v1092
    %1206 = vmatprep.subr.mxu0 0.0
    %1207 = vmatpush1.msra.mxu0 %v1090
    %1208 = vmatprep.subr.mxu0 0.0
    %1209 = vmatpush1.msra.mxu0 %v1088
    %1210 = vmatprep.subr.mxu0 0.0
    %1211 = vmatpush1.msra.mxu0 %v1086
    %1212 = vmatprep.subr.mxu0 0.0
    %1213 = vmatpush1.msra.mxu0 %v1084
    %1214 = vmatprep.subr.mxu0 0.0
    %1215 = vmatpush1.msra.mxu0 %v1082
    %1216 = vmatprep.subr.mxu0 0.0
    %1217 = vmatpush1.msra.mxu0 %v1080
    %1218 = vmatprep.subr.mxu0 0.0
    %1219 = vmatpush1.msra.mxu0 %v1078
    %1220 = vmatprep.subr.mxu0 0.0
    %1221 = vmatpush1.msra.mxu0 %v1076
    %1222 = vmatprep.subr.mxu0 0.0
    %1223 = vmatpush1.msra.mxu0 %v1074
    %1224 = vmatprep.subr.mxu0 0.0
    %1225 = vmatpush1.msra.mxu0 %v1072
    %1226 = vmatprep.subr.mxu0 0.0
    %1227 = vmatpush2.msra.mxu0 0.0
    %1228 = vmatprep.subr.mxu0 0.0
    %1229 = vmatpush2.msra.mxu0 0.0
    %1230 = vmatprep.subr.mxu0 0.0
    %1231 = vmatpush2.msra.mxu0 0.0
    %1232 = vmatprep.subr.mxu0 0.0
    %1233 = vmatpush2.msra.mxu0 0.0
    %1234 = vmatprep.subr.mxu0 0.0
    %1235 = vmatpush2.msra.mxu0 0.0
    %1236 = vmatprep.subr.mxu0 0.0
    %1237 = vmatpush2.msra.mxu0 0.0
    %1238 = vmatprep.subr.mxu0 0.0
    %1239 = vmatpush2.msra.mxu0 0.0
    %1240 = vmatprep.subr.mxu0 0.0
    %1241 = vmatpush2.msra.mxu0 0.0
    %1242 = vmatprep.subr.mxu0 0.0
    %1243 = vmatpush2.msra.mxu0 0.0
    %1244 = vmatprep.subr.mxu0 0.0
    %1245 = vmatpush2.msra.mxu0 0.0
    %1246 = vmatprep.subr.mxu0 0.0
    %1247 = vmatpush2.msra.mxu0 0.0
    %1248 = vmatprep.subr.mxu0 0.0
    %1249 = vmatpush2.msra.mxu0 0.0
    %1250 = vmatprep.subr.mxu0 0.0
    %1251 = vmatpush2.msra.mxu0 0.0
    %1252 = vmatprep.subr.mxu0 0.0
    %1253 = vmatpush2.msra.mxu0 0.0
    %1254 = vmatprep.subr.mxu0 0.0
    %1255 = vmatpush2.msra.mxu0 0.0
    %1256 = vmatprep.subr.mxu0 0.0
    %1257 = vmatpush2.msra.mxu0 0.0
    %1258 = vmatprep.mubr.f32.mxu0 0.0
    %1259 = vmatmul.mubr.f32.gmra.mxu0 %v1193
    %v1260 = vpop.f32.mrf.mxu0
    %v1261 = vadd.f32 0.0, %v1260
    %v1262 = vpop.f32.mrf.mxu0
    %1263 = vdwg.mxu0
    %1264 = vmatprep.subr.mxu0 0.0
    %1265 = vmatpush1.msra.mxu0 %v1101
    %1266 = vmatprep.subr.mxu0 0.0
    %1267 = vmatpush1.msra.mxu0 %v1099
    %1268 = vmatprep.subr.mxu0 0.0
    %1269 = vmatpush1.msra.mxu0 %v1097
    %1270 = vmatprep.subr.mxu0 0.0
    %1271 = vmatpush1.msra.mxu0 %v1095
    %1272 = vmatprep.subr.mxu0 0.0
    %1273 = vmatpush1.msra.mxu0 %v1093
    %1274 = vmatprep.subr.mxu0 0.0
    %1275 = vmatpush1.msra.mxu0 %v1091
    %1276 = vmatprep.subr.mxu0 0.0
    %1277 = vmatpush1.msra.mxu0 %v1089
    %1278 = vmatprep.subr.mxu0 0.0
    %1279 = vmatpush1.msra.mxu0 %v1087
    %1280 = vmatprep.subr.mxu0 0.0
    %1281 = vmatpush1.msra.mxu0 %v1085
    %1282 = vmatprep.subr.mxu0 0.0
    %1283 = vmatpush1.msra.mxu0 %v1083
    %1284 = vmatprep.subr.mxu0 0.0
    %1285 = vmatpush1.msra.mxu0 %v1081
    %1286 = vmatprep.subr.mxu0 0.0
    %1287 = vmatpush1.msra.mxu0 %v1079
    %1288 = vmatprep.subr.mxu0 0.0
    %1289 = vmatpush1.msra.mxu0 %v1077
    %1290 = vmatprep.subr.mxu0 0.0
    %1291 = vmatpush1.msra.mxu0 %v1075
    %1292 = vmatprep.subr.mxu0 0.0
    %1293 = vmatpush1.msra.mxu0 %v1073
    %1294 = vmatprep.subr.mxu0 0.0
    %1295 = vmatpush1.msra.mxu0 %v1071
    %1296 = vmatprep.subr.mxu0 0.0
    %1297 = vmatpush2.msra.mxu0 0.0
    %1298 = vmatprep.subr.mxu0 0.0
    %1299 = vmatpush2.msra.mxu0 0.0
    %1300 = vmatprep.subr.mxu0 0.0
    %1301 = vmatpush2.msra.mxu0 0.0
    %1302 = vmatprep.subr.mxu0 0.0
    %1303 = vmatpush2.msra.mxu0 0.0
    %1304 = vmatprep.subr.mxu0 0.0
    %1305 = vmatpush2.msra.mxu0 0.0
    %1306 = vmatprep.subr.mxu0 0.0
    %1307 = vmatpush2.msra.mxu0 0.0
    %1308 = vmatprep.subr.mxu0 0.0
    %1309 = vmatpush2.msra.mxu0 0.0
    %1310 = vmatprep.subr.mxu0 0.0
    %1311 = vmatpush2.msra.mxu0 0.0
    %1312 = vmatprep.subr.mxu0 0.0
    %1313 = vmatpush2.msra.mxu0 0.0
    %1314 = vmatprep.subr.mxu0 0.0
    %1315 = vmatpush2.msra.mxu0 0.0
    %1316 = vmatprep.subr.mxu0 0.0
    %1317 = vmatpush2.msra.mxu0 0.0
    %1318 = vmatprep.subr.mxu0 0.0
    %1319 = vmatpush2.msra.mxu0 0.0
    %1320 = vmatprep.subr.mxu0 0.0
    %1321 = vmatpush2.msra.mxu0 0.0
    %1322 = vmatprep.subr.mxu0 0.0
    %1323 = vmatpush2.msra.mxu0 0.0
    %1324 = vmatprep.subr.mxu0 0.0
    %1325 = vmatpush2.msra.mxu0 0.0
    %1326 = vmatprep.subr.mxu0 0.0
    %1327 = vmatpush2.msra.mxu0 0.0
    %1328 = vmatprep.mubr.f32.mxu0 0.0
    %1329 = vmatmul.mubr.f32.gmra.mxu0 %v1192
    %v1330 = vpop.f32.mrf.mxu0
    %v1331 = vadd.f32 %v1261, %v1330
    %v1332 = vpop.f32.mrf.mxu0
    %1333 = vdwg.mxu0
    %v1334 = vadd.f32 %v1331, %v1103
    %vm1335 = vcmp.lt.s32.totalorder %v168, 4
    %v1336 = vtanh.pop %v1334
    %v1337 = vsel %vm1335, %v1336, %v1334
    %1338 = vst [vmem:[%s3] sm:$0x3] %v1337
    // Predicated region
    $region22: #{lstm_memory_optimizer_forward.1} parent=1 // pred_check
      _
    $region23: #{lstm_memory_optimizer_forward.1} parent=1 // pred_check_branch
      %1340 = sbr.rel (0) target = $region25
    $region24: #{lstm_memory_optimizer_forward.1} parent=1 // pred_region
      _
    $region25: #{lstm_memory_optimizer_forward.1} parent=1 // pred_fallthru
      _
    // Predicated region
    $region26: #{lstm_memory_optimizer_forward.1} parent=1 // pred_check
      _
    $region27: #{lstm_memory_optimizer_forward.1} parent=1 // pred_check_branch
      %1342 = sbr.rel (0) target = $region29
    $region28: #{lstm_memory_optimizer_forward.1} parent=1 // pred_region
      _
    $region29: #{lstm_memory_optimizer_forward.1} parent=1 // pred_fallthru
      _
    %1343 = vsyncpa [#allocation4], 1
    %1344 = vsyncpa [#allocation6], 1

</llo_original>
